<compile_context>
chip_gen: v5e
topology: v5e:2x2
jax: 0.10.0
libtpu: 0.0.40
codegen_flags: <defaults>
</compile_context>

<pallas_src>
import functools

import jax
import jax.numpy as jnp
from jax import lax
from jax.experimental import pallas as pl
from jax.experimental.pallas import tpu as pltpu


def _round_up(v, m):
    return ((v + m - 1) // m) * m


def _pad_gate_cols(w_t, h, h_pad):
    """w_t: (K, 4*h), PyTorch gate order (i, f, g, o) blocks along last axis.
    Returns (K, 4*h_pad): gate blocks reordered to (i, f, o, g) — so the kernel
    does ONE sigmoid over [:, :3*h_pad] and ONE tanh over [:, 3*h_pad:] — and
    each block zero-padded to h_pad lanes (lane-aligned slices, h_pad % 128 == 0)."""
    k = w_t.shape[0]
    w4 = w_t.reshape(k, 4, h)
    w4 = w4[:, jnp.array([0, 1, 3, 2]), :]          # (i, f, g, o) -> (i, f, o, g)
    w4 = jnp.pad(w4, ((0, 0), (0, 0), (0, h_pad - h)))
    return w4.reshape(k, 4 * h_pad)


def _lstm_kernel(x_ref, w_ih_ref, w_hh_ref, b_ref, w_fc_ref, b_fc_ref, out_ref,
                 h_scr, c_scr, xproj_scr, *, seq_len, chunk_len, need_mask,
                 unroll):
    chunk = pl.program_id(0)
    n_chunks = pl.num_programs(0)
    B_pad, H_pad = h_scr.shape
    H3 = 3 * H_pad

    @pl.when(chunk == 0)
    def _():
        h_scr[...] = jnp.zeros_like(h_scr)
        c_scr[...] = jnp.zeros_like(c_scr)

    # ---- Hoisted input projection for the whole chunk (one fat MXU matmul) ----
    # (Tc*B_pad, I) @ (I, 4*H_pad) + fused bias; stored bf16 to halve VMEM/vst.
    xproj_scr[...] = (
        jnp.dot(x_ref[...], w_ih_ref[...], preferred_element_type=jnp.float32)
        + b_ref[...]).astype(xproj_scr.dtype)

    # ---- Serial recurrence: one MXU matmul per timestep, h/c carried in vregs ----
    def step(s, carry):
        h, c = carry
        row0 = pl.multiple_of(s * B_pad, B_pad)
        # TODO(synk): hold W_hh^T in MXU weight registers across the unrolled
        # loop (pltpu.matmul_push_rhs once per chunk + matmul_acc_lhs/matmul_pop
        # per step) to drop the per-step RHS push from the serial critical path;
        # needs per-generation MXU tile handling, so plain jnp.dot is kept here.
        gates = (xproj_scr[pl.ds(row0, B_pad), :].astype(jnp.float32)
                 + jnp.dot(h.astype(w_hh_ref.dtype), w_hh_ref[...],
                           preferred_element_type=jnp.float32))
        # Gate columns pre-ordered (i, f, o | g): one sigmoid + one tanh dispatch.
        sig = jax.nn.sigmoid(gates[:, :H3])
        i_g = sig[:, 0:H_pad]
        f_g = sig[:, H_pad:2 * H_pad]
        o_g = sig[:, 2 * H_pad:H3]
        g_g = jnp.tanh(gates[:, H3:])
        c_new = f_g * c + i_g * g_g
        h_new = o_g * jnp.tanh(c_new)
        if need_mask:  # only emitted when T is not a multiple of chunk_len
            valid = (chunk * chunk_len + s) < seq_len
            h_new = jnp.where(valid, h_new, h)
            c_new = jnp.where(valid, c_new, c)
        return h_new, c_new

    h_fin, c_fin = lax.fori_loop(0, chunk_len, step,
                                 (h_scr[...], c_scr[...]), unroll=unroll)

    # Carry h/c to the next chunk (skipped on the last chunk: nothing reads it).
    @pl.when(chunk < n_chunks - 1)
    def _():
        h_scr[...] = h_fin
        c_scr[...] = c_fin

    # Fused final Linear on the last hidden state; single lane-dense store,
    # guarded so only the last chunk writes the output block.
    @pl.when(chunk == n_chunks - 1)
    def _():
        o = (jnp.dot(h_fin.astype(w_fc_ref.dtype), w_fc_ref[...],
                     preferred_element_type=jnp.float32) + b_fc_ref[...])
        out_ref[...] = o.astype(out_ref.dtype)


def lstm_model_forward(x, params, *, chunk_len=None,
                       compute_dtype=jnp.bfloat16,
                       xproj_dtype=jnp.bfloat16,
                       unroll=8):
    """x: (B, T, I) batch_first, like PyTorch. Returns (B, O)."""
    w_ih, w_hh = params["w_ih"], params["w_hh"]
    b_ih, b_hh = params["b_ih"], params["b_hh"]
    w_fc, b_fc = params["w_fc"], params["b_fc"]

    B, T, I = x.shape
    fourH = w_ih.shape[0]
    H = fourH // 4
    O = w_fc.shape[0]

    # Sublane quantum for the xproj per-step slices (16 when xproj is bf16).
    sublane = 32 // jnp.dtype(xproj_dtype).itemsize
    B_pad = _round_up(B, sublane)
    H_pad = _round_up(H, 128)     # lane quantum -> lane-aligned gate slices
    O_pad = _round_up(O, 128)     # lane-dense output block
    if chunk_len is None:
        # Larger chunks amortize the ~0.35us/grid-step overhead; bf16 xproj keeps
        # chunk_len=32 within v7x's 64 MiB budget at non-toy H.
        chunk_len = T if T <= 64 else 32
    n_chunks = pl.cdiv(T, chunk_len)
    T_pad = n_chunks * chunk_len
    need_mask = (T_pad != T)

    # Cast FIRST, then transpose/pad/flatten (each materializes in HBM in XLA).
    x_tm = jnp.transpose(x.astype(compute_dtype), (1, 0, 2))         # (T, B, I)
    x_tm = jnp.pad(x_tm, ((0, T_pad - T), (0, B_pad - B), (0, 0)))
    x2d = x_tm.reshape(T_pad * B_pad, I)                             # (T_pad*B_pad, I)

    # Gate-reordered (i,f,o,g), gate-padded, pre-transposed weights; bf16 at the
    # MXU with f32 accumulation in-kernel.
    w_ih_t = _pad_gate_cols(w_ih.T, H, H_pad).astype(compute_dtype)            # (I, 4*H_pad)
    w_hh_t = _pad_gate_cols(w_hh.T, H, H_pad)                                  # (H, 4*H_pad)
    w_hh_t = jnp.pad(w_hh_t, ((0, H_pad - H), (0, 0))).astype(compute_dtype)   # (H_pad, 4*H_pad)
    b = _pad_gate_cols((b_ih + b_hh).reshape(1, fourH), H, H_pad)              # (1, 4*H_pad)
    b = b.astype(jnp.float32)
    w_fc_t = jnp.pad(w_fc.T, ((0, H_pad - H), (0, O_pad - O))).astype(compute_dtype)
    b_fc_row = jnp.pad(b_fc, (0, O_pad - O)).reshape(1, O_pad).astype(jnp.float32)

    kernel = functools.partial(_lstm_kernel, seq_len=T, chunk_len=chunk_len,
                               need_mask=need_mask,
                               unroll=int(min(unroll, chunk_len)))

    # Constant-index blocks never change across grid steps -> single buffer.
    const = dict(pipeline_mode=pl.Buffered(buffer_count=1))

    grid_spec = pltpu.PrefetchScalarGridSpec(
        num_scalar_prefetch=0,
        grid=(n_chunks,),
        in_specs=[
            pl.BlockSpec((chunk_len * B_pad, I), lambda t: (t, 0)),        # x chunk
            pl.BlockSpec((I, 4 * H_pad), lambda t: (0, 0), **const),       # W_ih^T
            pl.BlockSpec((H_pad, 4 * H_pad), lambda t: (0, 0), **const),   # W_hh^T
            pl.BlockSpec((1, 4 * H_pad), lambda t: (0, 0), **const),       # fused bias
            pl.BlockSpec((H_pad, O_pad), lambda t: (0, 0), **const),       # W_fc^T
            pl.BlockSpec((1, O_pad), lambda t: (0, 0), **const),           # b_fc
        ],
        out_specs=pl.BlockSpec((B_pad, O_pad), lambda t: (0, 0)),          # fc(h_T)
        scratch_shapes=[
            pltpu.VMEM((B_pad, H_pad), jnp.float32),                       # h carry
            pltpu.VMEM((B_pad, H_pad), jnp.float32),                       # c carry
            pltpu.VMEM((chunk_len * B_pad, 4 * H_pad), xproj_dtype),       # x-projection
        ],
    )

    # Explicit scoped-VMEM budget from the actual footprint (+headroom);
    # v5e's default scoped limit (16 MiB) would bind long before physical VMEM.
    cs = jnp.dtype(compute_dtype).itemsize
    xs = jnp.dtype(xproj_dtype).itemsize
    est = (2 * chunk_len * B_pad * I * cs            # x chunk (double-buffered)
           + I * 4 * H_pad * cs                      # W_ih^T   (1 buffer)
           + H_pad * 4 * H_pad * cs                  # W_hh^T   (1 buffer)
           + 4 * H_pad * 4                           # bias     (1 buffer)
           + H_pad * O_pad * cs + O_pad * 4          # FC weights
           + 2 * B_pad * O_pad * 4                   # out block
           + 2 * B_pad * H_pad * 4                   # h/c scratch
           + chunk_len * B_pad * 4 * H_pad * xs)     # xproj scratch
    vmem_limit = int(min(100 << 20, max(16 << 20, 2 * est + (4 << 20))))

    out = pl.pallas_call(
        kernel,
        out_shape=jax.ShapeDtypeStruct((B_pad, O_pad), jnp.float32),
        grid_spec=grid_spec,
        compiler_params=pltpu.CompilerParams(
            dimension_semantics=("arbitrary",),      # serial recurrence over time
            vmem_limit_bytes=vmem_limit),
    )(x2d, w_ih_t, w_hh_t, b, w_fc_t, b_fc_row)

    # TODO(synk): on v7x (2 TensorCores) add a leading batch-parallel grid axis
    # (split B_pad>=16 sequences across cores); not applicable at this toy batch.
    return out[:B, :O].astype(x.dtype)


def lstm_model_reference(x, params):
    """Pure-JAX f32 reference matching PyTorch nn.LSTM (1 layer) + Linear."""
    w_ih, w_hh, b_ih, b_hh, w_fc, b_fc = (
        params["w_ih"], params["w_hh"], params["b_ih"], params["b_hh"],
        params["w_fc"], params["b_fc"])
    B, T, _ = x.shape
    H = w_hh.shape[1]
    h = jnp.zeros((B, H), jnp.float32)
    c = jnp.zeros((B, H), jnp.float32)
    for t in range(T):
        g = x[:, t, :] @ w_ih.T + b_ih + h @ w_hh.T + b_hh
        i = jax.nn.sigmoid(g[:, 0 * H:1 * H])
        f = jax.nn.sigmoid(g[:, 1 * H:2 * H])
        gg = jnp.tanh(g[:, 2 * H:3 * H])
        o = jax.nn.sigmoid(g[:, 3 * H:4 * H])
        c = f * c + i * gg
        h = o * jnp.tanh(c)
    return h @ w_fc.T + b_fc


if __name__ == "__main__":
    # Small shapes consistent with the module's forward.
    B, T, I, H, O = 2, 8, 16, 32, 8

    key = jax.random.PRNGKey(0)
    ks = jax.random.split(key, 7)
    scale = 1.0 / jnp.sqrt(H)
    params = {
        "w_ih": jax.random.uniform(ks[0], (4 * H, I), jnp.float32, -scale, scale),
        "w_hh": jax.random.uniform(ks[1], (4 * H, H), jnp.float32, -scale, scale),
        "b_ih": jax.random.uniform(ks[2], (4 * H,), jnp.float32, -scale, scale),
        "b_hh": jax.random.uniform(ks[3], (4 * H,), jnp.float32, -scale, scale),
        "w_fc": jax.random.uniform(ks[4], (O, H), jnp.float32, -scale, scale),
        "b_fc": jax.random.uniform(ks[5], (O,), jnp.float32, -scale, scale),
    }
    x = jax.random.normal(ks[6], (B, T, I), jnp.float32)

    out = jax.block_until_ready(lstm_model_forward(x, params))
    ref = lstm_model_reference(x, params)
    assert out.shape == (B, O)
    # bf16 MXU operands / bf16 xproj storage with f32 accumulation -> loosened
    # tolerance vs the f32 reference.
    assert jnp.allclose(out, ref, atol=2e-2, rtol=2e-2), "mismatch vs reference"
    print("KERNEL_OK")
</pallas_src>

<mosaic_0001>
module attributes {stable_mosaic.version = 11 : i64} {
  func.func @_lstm_kernel(%arg0: i32, %arg1: memref<128x16xbf16, #tpu.memory_space<vmem>>, %arg2: memref<16x512xbf16, #tpu.memory_space<vmem>>, %arg3: memref<128x512xbf16, #tpu.memory_space<vmem>>, %arg4: memref<1x512xf32, #tpu.memory_space<vmem>>, %arg5: memref<128x128xbf16, #tpu.memory_space<vmem>>, %arg6: memref<1x128xf32, #tpu.memory_space<vmem>>, %arg7: memref<16x128xf32, #tpu.memory_space<vmem>>, %arg8: memref<16x128xf32, #tpu.memory_space<vmem>>, %arg9: memref<16x128xf32, #tpu.memory_space<vmem>>, %arg10: memref<128x512xbf16, #tpu.memory_space<vmem>>) attributes {dimension_semantics = [#tpu.dimension_semantics<arbitrary>], iteration_bounds = array<i64: 1>, scalar_prefetch = 0 : i64, scratch_operands = 3 : i64, tpu.core_type = #tpu.core_type<tc>, window_params = [{transform_indices = @transform_0, window_bounds = array<i64: 128, 16>}, {pipeline_mode = #tpu.pipeline_mode<synchronous>, transform_indices = @transform_1, window_bounds = array<i64: 16, 512>}, {pipeline_mode = #tpu.pipeline_mode<synchronous>, transform_indices = @transform_2, window_bounds = array<i64: 128, 512>}, {pipeline_mode = #tpu.pipeline_mode<synchronous>, transform_indices = @transform_3, window_bounds = array<i64: 1, 512>}, {pipeline_mode = #tpu.pipeline_mode<synchronous>, transform_indices = @transform_4, window_bounds = array<i64: 128, 128>}, {pipeline_mode = #tpu.pipeline_mode<synchronous>, transform_indices = @transform_5, window_bounds = array<i64: 1, 128>}, {pipeline_mode = #tpu.pipeline_mode<synchronous>, transform_indices = @transform_6, window_bounds = array<i64: 16, 128>}]} {
    %c0_i32 = arith.constant 0 : i32
    %0 = arith.cmpi eq, %arg0, %c0_i32 : i32
    %1 = arith.extui %0 : i1 to i32
    %c0_i32_0 = arith.constant 0 : i32
    %2 = arith.cmpi ne, %1, %c0_i32_0 : i32
    scf.if %2 {
      %cst_64 = arith.constant 0.000000e+00 : f32
      %219 = vector.broadcast %cst_64 : f32 to vector<16x128xf32>
      %c0_65 = arith.constant 0 : index
      %c0_66 = arith.constant 0 : index
      %220 = vector.load %arg8[%c0_65, %c0_66] : memref<16x128xf32, #tpu.memory_space<vmem>>, vector<16x128xf32>
      tpu.vector_store %arg8[%c0_65, %c0_66], %219 {strides = array<i32>} : memref<16x128xf32, #tpu.memory_space<vmem>>, vector<16x128xf32>,
      %cst_67 = arith.constant 0.000000e+00 : f32
      %221 = vector.broadcast %cst_67 : f32 to vector<16x128xf32>
      %c0_68 = arith.constant 0 : index
      %c0_69 = arith.constant 0 : index
      %222 = vector.load %arg9[%c0_68, %c0_69] : memref<16x128xf32, #tpu.memory_space<vmem>>, vector<16x128xf32>
      tpu.vector_store %arg9[%c0_68, %c0_69], %221 {strides = array<i32>} : memref<16x128xf32, #tpu.memory_space<vmem>>, vector<16x128xf32>,
    } else {
    }
    %c0 = arith.constant 0 : index
    %c0_1 = arith.constant 0 : index
    %3 = vector.load %arg1[%c0, %c0_1] : memref<128x16xbf16, #tpu.memory_space<vmem>>, vector<128x16xbf16>
    %c0_2 = arith.constant 0 : index
    %c0_3 = arith.constant 0 : index
    %4 = vector.load %arg2[%c0_2, %c0_3] : memref<16x512xbf16, #tpu.memory_space<vmem>>, vector<16x512xbf16>
    %cst = arith.constant dense<0.000000e+00> : vector<128x512xf32>
    %5 = tpu.matmul %3, %4, %cst {dimension_numbers = #tpu.dot_dimension_numbers<[1], [0], [0], [1], [0, 0, 1, 1], [], []>} : vector<128x16xbf16>, vector<16x512xbf16>, vector<128x512xf32> -> vector<128x512xf32>
    %c0_4 = arith.constant 0 : index
    %c0_5 = arith.constant 0 : index
    %6 = vector.load %arg4[%c0_4, %c0_5] : memref<1x512xf32, #tpu.memory_space<vmem>>, vector<1x512xf32>
    %7 = vector.broadcast %6 : vector<1x512xf32> to vector<128x512xf32>
    %8 = arith.addf %5, %7 : vector<128x512xf32>
    %9 = arith.truncf %8 : vector<128x512xf32> to vector<128x512xbf16>
    %c0_6 = arith.constant 0 : index
    %c0_7 = arith.constant 0 : index
    %10 = vector.load %arg10[%c0_6, %c0_7] : memref<128x512xbf16, #tpu.memory_space<vmem>>, vector<128x512xbf16>
    tpu.vector_store %arg10[%c0_6, %c0_7], %9 {strides = array<i32>} : memref<128x512xbf16, #tpu.memory_space<vmem>>, vector<128x512xbf16>,
    %c0_8 = arith.constant 0 : index
    %c0_9 = arith.constant 0 : index
    %11 = vector.load %arg8[%c0_8, %c0_9] : memref<16x128xf32, #tpu.memory_space<vmem>>, vector<16x128xf32>
    %c0_10 = arith.constant 0 : index
    %c0_11 = arith.constant 0 : index
    %12 = vector.load %arg9[%c0_10, %c0_11] : memref<16x128xf32, #tpu.memory_space<vmem>>, vector<16x128xf32>
    %c0_i32_12 = arith.constant 0 : i32
    %c16_i32 = arith.constant 16 : i32
    %13 = arith.muli %c0_i32_12, %c16_i32 : i32
    %14 = tpu.assume_multiple %13, 16 : i32
    %15 = arith.index_cast %14 : i32 to index
    %c0_13 = arith.constant 0 : index
    %16 = vector.load %arg10[%15, %c0_13] : memref<128x512xbf16, #tpu.memory_space<vmem>>, vector<16x512xbf16>
    %17 = arith.extf %16 : vector<16x512xbf16> to vector<16x512xf32>
    %18 = arith.truncf %11 : vector<16x128xf32> to vector<16x128xbf16>
    %c0_14 = arith.constant 0 : index
    %c0_15 = arith.constant 0 : index
    %19 = vector.load %arg3[%c0_14, %c0_15] : memref<128x512xbf16, #tpu.memory_space<vmem>>, vector<128x512xbf16>
    %cst_16 = arith.constant dense<0.000000e+00> : vector<16x512xf32>
    %20 = tpu.matmul %18, %19, %cst_16 {dimension_numbers = #tpu.dot_dimension_numbers<[1], [0], [0], [1], [0, 0, 1, 1], [], []>} : vector<16x128xbf16>, vector<128x512xbf16>, vector<16x512xf32> -> vector<16x512xf32>
    %21 = arith.addf %17, %20 : vector<16x512xf32>
    %22 = vector.extract_strided_slice %21 {offsets = [0, 0], sizes = [16, 384], strides = [1, 1]} : vector<16x512xf32> to vector<16x384xf32>
    %23 = arith.negf %22 : vector<16x384xf32>
    %24 = math.exp %23 : vector<16x384xf32>
    %cst_17 = arith.constant 1.000000e+00 : f32
    %25 = vector.broadcast %cst_17 : f32 to vector<16x384xf32>
    %26 = arith.addf %25, %24 : vector<16x384xf32>
    %27 = arith.divf %25, %26 : vector<16x384xf32>
    %28 = vector.extract_strided_slice %27 {offsets = [0, 0], sizes = [16, 128], strides = [1, 1]} : vector<16x384xf32> to vector<16x128xf32>
    %29 = vector.extract_strided_slice %27 {offsets = [0, 128], sizes = [16, 128], strides = [1, 1]} : vector<16x384xf32> to vector<16x128xf32>
    %30 = vector.extract_strided_slice %27 {offsets = [0, 256], sizes = [16, 128], strides = [1, 1]} : vector<16x384xf32> to vector<16x128xf32>
    %31 = vector.extract_strided_slice %21 {offsets = [0, 384], sizes = [16, 128], strides = [1, 1]} : vector<16x512xf32> to vector<16x128xf32>
    %32 = math.tanh %31 : vector<16x128xf32>
    %33 = arith.mulf %29, %12 : vector<16x128xf32>
    %34 = arith.mulf %28, %32 : vector<16x128xf32>
    %35 = arith.addf %33, %34 : vector<16x128xf32>
    %36 = math.tanh %35 : vector<16x128xf32>
    %37 = arith.mulf %30, %36 : vector<16x128xf32>
    %c1_i32 = arith.constant 1 : i32
    %c16_i32_18 = arith.constant 16 : i32
    %38 = arith.muli %c1_i32, %c16_i32_18 : i32
    %39 = tpu.assume_multiple %38, 16 : i32
    %40 = arith.index_cast %39 : i32 to index
    %c0_19 = arith.constant 0 : index
    %41 = vector.load %arg10[%40, %c0_19] : memref<128x512xbf16, #tpu.memory_space<vmem>>, vector<16x512xbf16>
    %42 = arith.extf %41 : vector<16x512xbf16> to vector<16x512xf32>
    %43 = arith.truncf %37 : vector<16x128xf32> to vector<16x128xbf16>
    %c0_20 = arith.constant 0 : index
    %c0_21 = arith.constant 0 : index
    %44 = vector.load %arg3[%c0_20, %c0_21] : memref<128x512xbf16, #tpu.memory_space<vmem>>, vector<128x512xbf16>
    %cst_22 = arith.constant dense<0.000000e+00> : vector<16x512xf32>
    %45 = tpu.matmul %43, %44, %cst_22 {dimension_numbers = #tpu.dot_dimension_numbers<[1], [0], [0], [1], [0, 0, 1, 1], [], []>} : vector<16x128xbf16>, vector<128x512xbf16>, vector<16x512xf32> -> vector<16x512xf32>
    %46 = arith.addf %42, %45 : vector<16x512xf32>
    %47 = vector.extract_strided_slice %46 {offsets = [0, 0], sizes = [16, 384], strides = [1, 1]} : vector<16x512xf32> to vector<16x384xf32>
    %48 = arith.negf %47 : vector<16x384xf32>
    %49 = math.exp %48 : vector<16x384xf32>
    %cst_23 = arith.constant 1.000000e+00 : f32
    %50 = vector.broadcast %cst_23 : f32 to vector<16x384xf32>
    %51 = arith.addf %50, %49 : vector<16x384xf32>
    %52 = arith.divf %50, %51 : vector<16x384xf32>
    %53 = vector.extract_strided_slice %52 {offsets = [0, 0], sizes = [16, 128], strides = [1, 1]} : vector<16x384xf32> to vector<16x128xf32>
    %54 = vector.extract_strided_slice %52 {offsets = [0, 128], sizes = [16, 128], strides = [1, 1]} : vector<16x384xf32> to vector<16x128xf32>
    %55 = vector.extract_strided_slice %52 {offsets = [0, 256], sizes = [16, 128], strides = [1, 1]} : vector<16x384xf32> to vector<16x128xf32>
    %56 = vector.extract_strided_slice %46 {offsets = [0, 384], sizes = [16, 128], strides = [1, 1]} : vector<16x512xf32> to vector<16x128xf32>
    %57 = math.tanh %56 : vector<16x128xf32>
    %58 = arith.mulf %54, %35 : vector<16x128xf32>
    %59 = arith.mulf %53, %57 : vector<16x128xf32>
    %60 = arith.addf %58, %59 : vector<16x128xf32>
    %61 = math.tanh %60 : vector<16x128xf32>
    %62 = arith.mulf %55, %61 : vector<16x128xf32>
    %c2_i32 = arith.constant 2 : i32
    %c16_i32_24 = arith.constant 16 : i32
    %63 = arith.muli %c2_i32, %c16_i32_24 : i32
    %64 = tpu.assume_multiple %63, 16 : i32
    %65 = arith.index_cast %64 : i32 to index
    %c0_25 = arith.constant 0 : index
    %66 = vector.load %arg10[%65, %c0_25] : memref<128x512xbf16, #tpu.memory_space<vmem>>, vector<16x512xbf16>
    %67 = arith.extf %66 : vector<16x512xbf16> to vector<16x512xf32>
    %68 = arith.truncf %62 : vector<16x128xf32> to vector<16x128xbf16>
    %c0_26 = arith.constant 0 : index
    %c0_27 = arith.constant 0 : index
    %69 = vector.load %arg3[%c0_26, %c0_27] : memref<128x512xbf16, #tpu.memory_space<vmem>>, vector<128x512xbf16>
    %cst_28 = arith.constant dense<0.000000e+00> : vector<16x512xf32>
    %70 = tpu.matmul %68, %69, %cst_28 {dimension_numbers = #tpu.dot_dimension_numbers<[1], [0], [0], [1], [0, 0, 1, 1], [], []>} : vector<16x128xbf16>, vector<128x512xbf16>, vector<16x512xf32> -> vector<16x512xf32>
    %71 = arith.addf %67, %70 : vector<16x512xf32>
    %72 = vector.extract_strided_slice %71 {offsets = [0, 0], sizes = [16, 384], strides = [1, 1]} : vector<16x512xf32> to vector<16x384xf32>
    %73 = arith.negf %72 : vector<16x384xf32>
    %74 = math.exp %73 : vector<16x384xf32>
    %cst_29 = arith.constant 1.000000e+00 : f32
    %75 = vector.broadcast %cst_29 : f32 to vector<16x384xf32>
    %76 = arith.addf %75, %74 : vector<16x384xf32>
    %77 = arith.divf %75, %76 : vector<16x384xf32>
    %78 = vector.extract_strided_slice %77 {offsets = [0, 0], sizes = [16, 128], strides = [1, 1]} : vector<16x384xf32> to vector<16x128xf32>
    %79 = vector.extract_strided_slice %77 {offsets = [0, 128], sizes = [16, 128], strides = [1, 1]} : vector<16x384xf32> to vector<16x128xf32>
    %80 = vector.extract_strided_slice %77 {offsets = [0, 256], sizes = [16, 128], strides = [1, 1]} : vector<16x384xf32> to vector<16x128xf32>
    %81 = vector.extract_strided_slice %71 {offsets = [0, 384], sizes = [16, 128], strides = [1, 1]} : vector<16x512xf32> to vector<16x128xf32>
    %82 = math.tanh %81 : vector<16x128xf32>
    %83 = arith.mulf %79, %60 : vector<16x128xf32>
    %84 = arith.mulf %78, %82 : vector<16x128xf32>
    %85 = arith.addf %83, %84 : vector<16x128xf32>
    %86 = math.tanh %85 : vector<16x128xf32>
    %87 = arith.mulf %80, %86 : vector<16x128xf32>
    %c3_i32 = arith.constant 3 : i32
    %c16_i32_30 = arith.constant 16 : i32
    %88 = arith.muli %c3_i32, %c16_i32_30 : i32
    %89 = tpu.assume_multiple %88, 16 : i32
    %90 = arith.index_cast %89 : i32 to index
    %c0_31 = arith.constant 0 : index
    %91 = vector.load %arg10[%90, %c0_31] : memref<128x512xbf16, #tpu.memory_space<vmem>>, vector<16x512xbf16>
    %92 = arith.extf %91 : vector<16x512xbf16> to vector<16x512xf32>
    %93 = arith.truncf %87 : vector<16x128xf32> to vector<16x128xbf16>
    %c0_32 = arith.constant 0 : index
    %c0_33 = arith.constant 0 : index
    %94 = vector.load %arg3[%c0_32, %c0_33] : memref<128x512xbf16, #tpu.memory_space<vmem>>, vector<128x512xbf16>
    %cst_34 = arith.constant dense<0.000000e+00> : vector<16x512xf32>
    %95 = tpu.matmul %93, %94, %cst_34 {dimension_numbers = #tpu.dot_dimension_numbers<[1], [0], [0], [1], [0, 0, 1, 1], [], []>} : vector<16x128xbf16>, vector<128x512xbf16>, vector<16x512xf32> -> vector<16x512xf32>
    %96 = arith.addf %92, %95 : vector<16x512xf32>
    %97 = vector.extract_strided_slice %96 {offsets = [0, 0], sizes = [16, 384], strides = [1, 1]} : vector<16x512xf32> to vector<16x384xf32>
    %98 = arith.negf %97 : vector<16x384xf32>
    %99 = math.exp %98 : vector<16x384xf32>
    %cst_35 = arith.constant 1.000000e+00 : f32
    %100 = vector.broadcast %cst_35 : f32 to vector<16x384xf32>
    %101 = arith.addf %100, %99 : vector<16x384xf32>
    %102 = arith.divf %100, %101 : vector<16x384xf32>
    %103 = vector.extract_strided_slice %102 {offsets = [0, 0], sizes = [16, 128], strides = [1, 1]} : vector<16x384xf32> to vector<16x128xf32>
    %104 = vector.extract_strided_slice %102 {offsets = [0, 128], sizes = [16, 128], strides = [1, 1]} : vector<16x384xf32> to vector<16x128xf32>
    %105 = vector.extract_strided_slice %102 {offsets = [0, 256], sizes = [16, 128], strides = [1, 1]} : vector<16x384xf32> to vector<16x128xf32>
    %106 = vector.extract_strided_slice %96 {offsets = [0, 384], sizes = [16, 128], strides = [1, 1]} : vector<16x512xf32> to vector<16x128xf32>
    %107 = math.tanh %106 : vector<16x128xf32>
    %108 = arith.mulf %104, %85 : vector<16x128xf32>
    %109 = arith.mulf %103, %107 : vector<16x128xf32>
    %110 = arith.addf %108, %109 : vector<16x128xf32>
    %111 = math.tanh %110 : vector<16x128xf32>
    %112 = arith.mulf %105, %111 : vector<16x128xf32>
    %c4_i32 = arith.constant 4 : i32
    %c16_i32_36 = arith.constant 16 : i32
    %113 = arith.muli %c4_i32, %c16_i32_36 : i32
    %114 = tpu.assume_multiple %113, 16 : i32
    %115 = arith.index_cast %114 : i32 to index
    %c0_37 = arith.constant 0 : index
    %116 = vector.load %arg10[%115, %c0_37] : memref<128x512xbf16, #tpu.memory_space<vmem>>, vector<16x512xbf16>
    %117 = arith.extf %116 : vector<16x512xbf16> to vector<16x512xf32>
    %118 = arith.truncf %112 : vector<16x128xf32> to vector<16x128xbf16>
    %c0_38 = arith.constant 0 : index
    %c0_39 = arith.constant 0 : index
    %119 = vector.load %arg3[%c0_38, %c0_39] : memref<128x512xbf16, #tpu.memory_space<vmem>>, vector<128x512xbf16>
    %cst_40 = arith.constant dense<0.000000e+00> : vector<16x512xf32>
    %120 = tpu.matmul %118, %119, %cst_40 {dimension_numbers = #tpu.dot_dimension_numbers<[1], [0], [0], [1], [0, 0, 1, 1], [], []>} : vector<16x128xbf16>, vector<128x512xbf16>, vector<16x512xf32> -> vector<16x512xf32>
    %121 = arith.addf %117, %120 : vector<16x512xf32>
    %122 = vector.extract_strided_slice %121 {offsets = [0, 0], sizes = [16, 384], strides = [1, 1]} : vector<16x512xf32> to vector<16x384xf32>
    %123 = arith.negf %122 : vector<16x384xf32>
    %124 = math.exp %123 : vector<16x384xf32>
    %cst_41 = arith.constant 1.000000e+00 : f32
    %125 = vector.broadcast %cst_41 : f32 to vector<16x384xf32>
    %126 = arith.addf %125, %124 : vector<16x384xf32>
    %127 = arith.divf %125, %126 : vector<16x384xf32>
    %128 = vector.extract_strided_slice %127 {offsets = [0, 0], sizes = [16, 128], strides = [1, 1]} : vector<16x384xf32> to vector<16x128xf32>
    %129 = vector.extract_strided_slice %127 {offsets = [0, 128], sizes = [16, 128], strides = [1, 1]} : vector<16x384xf32> to vector<16x128xf32>
    %130 = vector.extract_strided_slice %127 {offsets = [0, 256], sizes = [16, 128], strides = [1, 1]} : vector<16x384xf32> to vector<16x128xf32>
    %131 = vector.extract_strided_slice %121 {offsets = [0, 384], sizes = [16, 128], strides = [1, 1]} : vector<16x512xf32> to vector<16x128xf32>
    %132 = math.tanh %131 : vector<16x128xf32>
    %133 = arith.mulf %129, %110 : vector<16x128xf32>
    %134 = arith.mulf %128, %132 : vector<16x128xf32>
    %135 = arith.addf %133, %134 : vector<16x128xf32>
    %136 = math.tanh %135 : vector<16x128xf32>
    %137 = arith.mulf %130, %136 : vector<16x128xf32>
    %c5_i32 = arith.constant 5 : i32
    %c16_i32_42 = arith.constant 16 : i32
    %138 = arith.muli %c5_i32, %c16_i32_42 : i32
    %139 = tpu.assume_multiple %138, 16 : i32
    %140 = arith.index_cast %139 : i32 to index
    %c0_43 = arith.constant 0 : index
    %141 = vector.load %arg10[%140, %c0_43] : memref<128x512xbf16, #tpu.memory_space<vmem>>, vector<16x512xbf16>
    %142 = arith.extf %141 : vector<16x512xbf16> to vector<16x512xf32>
    %143 = arith.truncf %137 : vector<16x128xf32> to vector<16x128xbf16>
    %c0_44 = arith.constant 0 : index
    %c0_45 = arith.constant 0 : index
    %144 = vector.load %arg3[%c0_44, %c0_45] : memref<128x512xbf16, #tpu.memory_space<vmem>>, vector<128x512xbf16>
    %cst_46 = arith.constant dense<0.000000e+00> : vector<16x512xf32>
    %145 = tpu.matmul %143, %144, %cst_46 {dimension_numbers = #tpu.dot_dimension_numbers<[1], [0], [0], [1], [0, 0, 1, 1], [], []>} : vector<16x128xbf16>, vector<128x512xbf16>, vector<16x512xf32> -> vector<16x512xf32>
    %146 = arith.addf %142, %145 : vector<16x512xf32>
    %147 = vector.extract_strided_slice %146 {offsets = [0, 0], sizes = [16, 384], strides = [1, 1]} : vector<16x512xf32> to vector<16x384xf32>
    %148 = arith.negf %147 : vector<16x384xf32>
    %149 = math.exp %148 : vector<16x384xf32>
    %cst_47 = arith.constant 1.000000e+00 : f32
    %150 = vector.broadcast %cst_47 : f32 to vector<16x384xf32>
    %151 = arith.addf %150, %149 : vector<16x384xf32>
    %152 = arith.divf %150, %151 : vector<16x384xf32>
    %153 = vector.extract_strided_slice %152 {offsets = [0, 0], sizes = [16, 128], strides = [1, 1]} : vector<16x384xf32> to vector<16x128xf32>
    %154 = vector.extract_strided_slice %152 {offsets = [0, 128], sizes = [16, 128], strides = [1, 1]} : vector<16x384xf32> to vector<16x128xf32>
    %155 = vector.extract_strided_slice %152 {offsets = [0, 256], sizes = [16, 128], strides = [1, 1]} : vector<16x384xf32> to vector<16x128xf32>
    %156 = vector.extract_strided_slice %146 {offsets = [0, 384], sizes = [16, 128], strides = [1, 1]} : vector<16x512xf32> to vector<16x128xf32>
    %157 = math.tanh %156 : vector<16x128xf32>
    %158 = arith.mulf %154, %135 : vector<16x128xf32>
    %159 = arith.mulf %153, %157 : vector<16x128xf32>
    %160 = arith.addf %158, %159 : vector<16x128xf32>
    %161 = math.tanh %160 : vector<16x128xf32>
    %162 = arith.mulf %155, %161 : vector<16x128xf32>
    %c6_i32 = arith.constant 6 : i32
    %c16_i32_48 = arith.constant 16 : i32
    %163 = arith.muli %c6_i32, %c16_i32_48 : i32
    %164 = tpu.assume_multiple %163, 16 : i32
    %165 = arith.index_cast %164 : i32 to index
    %c0_49 = arith.constant 0 : index
    %166 = vector.load %arg10[%165, %c0_49] : memref<128x512xbf16, #tpu.memory_space<vmem>>, vector<16x512xbf16>
    %167 = arith.extf %166 : vector<16x512xbf16> to vector<16x512xf32>
    %168 = arith.truncf %162 : vector<16x128xf32> to vector<16x128xbf16>
    %c0_50 = arith.constant 0 : index
    %c0_51 = arith.constant 0 : index
    %169 = vector.load %arg3[%c0_50, %c0_51] : memref<128x512xbf16, #tpu.memory_space<vmem>>, vector<128x512xbf16>
    %cst_52 = arith.constant dense<0.000000e+00> : vector<16x512xf32>
    %170 = tpu.matmul %168, %169, %cst_52 {dimension_numbers = #tpu.dot_dimension_numbers<[1], [0], [0], [1], [0, 0, 1, 1], [], []>} : vector<16x128xbf16>, vector<128x512xbf16>, vector<16x512xf32> -> vector<16x512xf32>
    %171 = arith.addf %167, %170 : vector<16x512xf32>
    %172 = vector.extract_strided_slice %171 {offsets = [0, 0], sizes = [16, 384], strides = [1, 1]} : vector<16x512xf32> to vector<16x384xf32>
    %173 = arith.negf %172 : vector<16x384xf32>
    %174 = math.exp %173 : vector<16x384xf32>
    %cst_53 = arith.constant 1.000000e+00 : f32
    %175 = vector.broadcast %cst_53 : f32 to vector<16x384xf32>
    %176 = arith.addf %175, %174 : vector<16x384xf32>
    %177 = arith.divf %175, %176 : vector<16x384xf32>
    %178 = vector.extract_strided_slice %177 {offsets = [0, 0], sizes = [16, 128], strides = [1, 1]} : vector<16x384xf32> to vector<16x128xf32>
    %179 = vector.extract_strided_slice %177 {offsets = [0, 128], sizes = [16, 128], strides = [1, 1]} : vector<16x384xf32> to vector<16x128xf32>
    %180 = vector.extract_strided_slice %177 {offsets = [0, 256], sizes = [16, 128], strides = [1, 1]} : vector<16x384xf32> to vector<16x128xf32>
    %181 = vector.extract_strided_slice %171 {offsets = [0, 384], sizes = [16, 128], strides = [1, 1]} : vector<16x512xf32> to vector<16x128xf32>
    %182 = math.tanh %181 : vector<16x128xf32>
    %183 = arith.mulf %179, %160 : vector<16x128xf32>
    %184 = arith.mulf %178, %182 : vector<16x128xf32>
    %185 = arith.addf %183, %184 : vector<16x128xf32>
    %186 = math.tanh %185 : vector<16x128xf32>
    %187 = arith.mulf %180, %186 : vector<16x128xf32>
    %c7_i32 = arith.constant 7 : i32
    %c16_i32_54 = arith.constant 16 : i32
    %188 = arith.muli %c7_i32, %c16_i32_54 : i32
    %189 = tpu.assume_multiple %188, 16 : i32
    %190 = arith.index_cast %189 : i32 to index
    %c0_55 = arith.constant 0 : index
    %191 = vector.load %arg10[%190, %c0_55] : memref<128x512xbf16, #tpu.memory_space<vmem>>, vector<16x512xbf16>
    %192 = arith.extf %191 : vector<16x512xbf16> to vector<16x512xf32>
    %193 = arith.truncf %187 : vector<16x128xf32> to vector<16x128xbf16>
    %c0_56 = arith.constant 0 : index
    %c0_57 = arith.constant 0 : index
    %194 = vector.load %arg3[%c0_56, %c0_57] : memref<128x512xbf16, #tpu.memory_space<vmem>>, vector<128x512xbf16>
    %cst_58 = arith.constant dense<0.000000e+00> : vector<16x512xf32>
    %195 = tpu.matmul %193, %194, %cst_58 {dimension_numbers = #tpu.dot_dimension_numbers<[1], [0], [0], [1], [0, 0, 1, 1], [], []>} : vector<16x128xbf16>, vector<128x512xbf16>, vector<16x512xf32> -> vector<16x512xf32>
    %196 = arith.addf %192, %195 : vector<16x512xf32>
    %197 = vector.extract_strided_slice %196 {offsets = [0, 0], sizes = [16, 384], strides = [1, 1]} : vector<16x512xf32> to vector<16x384xf32>
    %198 = arith.negf %197 : vector<16x384xf32>
    %199 = math.exp %198 : vector<16x384xf32>
    %cst_59 = arith.constant 1.000000e+00 : f32
    %200 = vector.broadcast %cst_59 : f32 to vector<16x384xf32>
    %201 = arith.addf %200, %199 : vector<16x384xf32>
    %202 = arith.divf %200, %201 : vector<16x384xf32>
    %203 = vector.extract_strided_slice %202 {offsets = [0, 0], sizes = [16, 128], strides = [1, 1]} : vector<16x384xf32> to vector<16x128xf32>
    %204 = vector.extract_strided_slice %202 {offsets = [0, 128], sizes = [16, 128], strides = [1, 1]} : vector<16x384xf32> to vector<16x128xf32>
    %205 = vector.extract_strided_slice %202 {offsets = [0, 256], sizes = [16, 128], strides = [1, 1]} : vector<16x384xf32> to vector<16x128xf32>
    %206 = vector.extract_strided_slice %196 {offsets = [0, 384], sizes = [16, 128], strides = [1, 1]} : vector<16x512xf32> to vector<16x128xf32>
    %207 = math.tanh %206 : vector<16x128xf32>
    %208 = arith.mulf %204, %185 : vector<16x128xf32>
    %209 = arith.mulf %203, %207 : vector<16x128xf32>
    %210 = arith.addf %208, %209 : vector<16x128xf32>
    %211 = math.tanh %210 : vector<16x128xf32>
    %212 = arith.mulf %205, %211 : vector<16x128xf32>
    %c8_i32 = arith.constant 8 : i32
    %c0_i32_60 = arith.constant 0 : i32
    %213 = arith.cmpi slt, %arg0, %c0_i32_60 : i32
    %214 = arith.extui %213 : i1 to i32
    %c0_i32_61 = arith.constant 0 : i32
    %215 = arith.cmpi ne, %214, %c0_i32_61 : i32
    scf.if %215 {
      %c0_64 = arith.constant 0 : index
      %c0_65 = arith.constant 0 : index
      %219 = vector.load %arg8[%c0_64, %c0_65] : memref<16x128xf32, #tpu.memory_space<vmem>>, vector<16x128xf32>
      tpu.vector_store %arg8[%c0_64, %c0_65], %212 {strides = array<i32>} : memref<16x128xf32, #tpu.memory_space<vmem>>, vector<16x128xf32>,
      %c0_66 = arith.constant 0 : index
      %c0_67 = arith.constant 0 : index
      %220 = vector.load %arg9[%c0_66, %c0_67] : memref<16x128xf32, #tpu.memory_space<vmem>>, vector<16x128xf32>
      tpu.vector_store %arg9[%c0_66, %c0_67], %210 {strides = array<i32>} : memref<16x128xf32, #tpu.memory_space<vmem>>, vector<16x128xf32>,
    } else {
    }
    %c0_i32_62 = arith.constant 0 : i32
    %216 = arith.cmpi eq, %arg0, %c0_i32_62 : i32
    %217 = arith.extui %216 : i1 to i32
    %c0_i32_63 = arith.constant 0 : i32
    %218 = arith.cmpi ne, %217, %c0_i32_63 : i32
    scf.if %218 {
      %219 = arith.truncf %212 : vector<16x128xf32> to vector<16x128xbf16>
      %c0_64 = arith.constant 0 : index
      %c0_65 = arith.constant 0 : index
      %220 = vector.load %arg5[%c0_64, %c0_65] : memref<128x128xbf16, #tpu.memory_space<vmem>>, vector<128x128xbf16>
      %cst_66 = arith.constant dense<0.000000e+00> : vector<16x128xf32>
      %221 = tpu.matmul %219, %220, %cst_66 {dimension_numbers = #tpu.dot_dimension_numbers<[1], [0], [0], [1], [0, 0, 1, 1], [], []>} : vector<16x128xbf16>, vector<128x128xbf16>, vector<16x128xf32> -> vector<16x128xf32>
      %c0_67 = arith.constant 0 : index
      %c0_68 = arith.constant 0 : index
      %222 = vector.load %arg6[%c0_67, %c0_68] : memref<1x128xf32, #tpu.memory_space<vmem>>, vector<1x128xf32>
      %223 = vector.broadcast %222 : vector<1x128xf32> to vector<16x128xf32>
      %224 = arith.addf %221, %223 : vector<16x128xf32>
      %c0_69 = arith.constant 0 : index
      %c0_70 = arith.constant 0 : index
      %225 = vector.load %arg7[%c0_69, %c0_70] : memref<16x128xf32, #tpu.memory_space<vmem>>, vector<16x128xf32>
      tpu.vector_store %arg7[%c0_69, %c0_70], %224 {strides = array<i32>} : memref<16x128xf32, #tpu.memory_space<vmem>>, vector<16x128xf32>,
    } else {
    }
    return
  }
  func.func @transform_0(%arg0: i32) -> (i32, i32) {
    %c0_i32 = arith.constant 0 : i32
    %c0_i32_0 = arith.constant 0 : i32
    return %arg0, %c0_i32 : i32, i32
  }
  func.func @transform_1(%arg0: i32) -> (i32, i32) {
    %c0_i32 = arith.constant 0 : i32
    %c0_i32_0 = arith.constant 0 : i32
    %c0_i32_1 = arith.constant 0 : i32
    return %c0_i32, %c0_i32_0 : i32, i32
  }
  func.func @transform_2(%arg0: i32) -> (i32, i32) {
    %c0_i32 = arith.constant 0 : i32
    %c0_i32_0 = arith.constant 0 : i32
    %c0_i32_1 = arith.constant 0 : i32
    return %c0_i32, %c0_i32_0 : i32, i32
  }
  func.func @transform_3(%arg0: i32) -> (i32, i32) {
    %c0_i32 = arith.constant 0 : i32
    %c0_i32_0 = arith.constant 0 : i32
    %c0_i32_1 = arith.constant 0 : i32
    return %c0_i32, %c0_i32_0 : i32, i32
  }
  func.func @transform_4(%arg0: i32) -> (i32, i32) {
    %c0_i32 = arith.constant 0 : i32
    %c0_i32_0 = arith.constant 0 : i32
    %c0_i32_1 = arith.constant 0 : i32
    return %c0_i32, %c0_i32_0 : i32, i32
  }
  func.func @transform_5(%arg0: i32) -> (i32, i32) {
    %c0_i32 = arith.constant 0 : i32
    %c0_i32_0 = arith.constant 0 : i32
    %c0_i32_1 = arith.constant 0 : i32
    return %c0_i32, %c0_i32_0 : i32, i32
  }
  func.func @transform_6(%arg0: i32) -> (i32, i32) {
    %c0_i32 = arith.constant 0 : i32
    %c0_i32_0 = arith.constant 0 : i32
    %c0_i32_1 = arith.constant 0 : i32
    return %c0_i32, %c0_i32_0 : i32, i32
  }
}

</mosaic_0001>

<llo_original>
// kernel: tpu_custom_call.1
$region0: #{tpu_custom_call.1}
  #allocation0 [shape = 'u32[]', space=smem, size = 0x4, offset = 0x4, fixed_abs, tag = 'smem constant byte address 0x4 - core index']
  #allocation1 [shape = 'u32[72,128]{1,0:T(1,128)}', space=vmem, size = 0x9000, scoped, tag = 'internal scratch']
  #allocation2 [shape = 'f32[16,128]{1,0:T(8,128)}', space=vmem, size = 0x2000, scoped, tag = 'scratch operand']
  #allocation3 [shape = 'f32[16,128]{1,0:T(8,128)}', space=vmem, size = 0x2000, scoped, tag = 'scratch operand']
  #allocation4 [shape = 'bf16[128,512]{1,0:T(8,128)(2,1)}', space=vmem, size = 0x20000, scoped, tag = 'scratch operand']
  %s0 = inlined_call_operand.vmem [shape: bf16[128,16], index: 0, kind: input, shape index: {}]
  %s1 = inlined_call_operand.hbm [shape: bf16[16,512], index: 1, kind: input, shape index: {}]
  %s2 = inlined_call_operand.hbm [shape: bf16[128,512], index: 2, kind: input, shape index: {}]
  %s3 = inlined_call_operand.vmem [shape: f32[1,512], index: 3, kind: input, shape index: {}]
  %s4 = inlined_call_operand.vmem [shape: bf16[128,128], index: 4, kind: input, shape index: {}]
  %s5 = inlined_call_operand.vmem [shape: f32[1,128], index: 5, kind: input, shape index: {}]
  %s6 = inlined_call_operand.hbm [shape: f32[16,128], index: 6, kind: output, shape index: {}]
  %s7 = sld [smem:[#allocation0]]
  $region54: #{tpu_custom_call.1} parent=0
    _
  %s9 = ssub.s32 1, %s7
  %s10 = scalar_select 0, %s9, %s7
  $region1: #{tpu_custom_call.1} parent=0
    #allocation5 [shape = 'u8[16384]{0}', space=vmem, size = 0x4000, scoped, tag = 'input window, operand 1, single buffered']
    #allocation6 [shape = 's32[1]{0}', space=sflag, size = 0x4, scoped, tag = 'scoped memory for tpu_custom_call.1']
    #allocation7 [shape = 's32[1]{0}', space=sflag, size = 0x4, scoped, tag = 'scoped memory for tpu_custom_call.1']
    #allocation8 [shape = 'u8[131072]{0}', space=vmem, size = 0x20000, scoped, tag = 'input window, operand 2, single buffered']
    #allocation9 [shape = 's32[1]{0}', space=sflag, size = 0x4, scoped, tag = 'scoped memory for tpu_custom_call.1']
    #allocation10 [shape = 'u8[8192]{0}', space=vmem, size = 0x2000, scoped, tag = 'output window, operand 0, single buffered']
    %11 = vsyncpa [#allocation6], 0
    %12 = vsyncpa [#allocation9], 0
    %13 = vsyncpa [#allocation7], 0
    // Predicated region
    $region2: #{tpu_custom_call.1} parent=1 // pred_check
      _
    $region3: #{tpu_custom_call.1} parent=1 // pred_check_branch
      %15 = sbr.rel (0) target = $region5
    $region4: #{tpu_custom_call.1} parent=1 // pred_region
      _
    $region5: #{tpu_custom_call.1} parent=1 // pred_fallthru
      _
    // Predicated region
    $region6: #{tpu_custom_call.1} parent=1 // pred_check
      _
    $region7: #{tpu_custom_call.1} parent=1 // pred_check_branch
      %17 = sbr.rel (0) target = $region9
    $region8: #{tpu_custom_call.1} parent=1 // pred_region
      %19 = vsyncadd [#allocation6], 0
      %s20 = sshll.u32 %s1, 4
      %s21 = int_to_ptr.hbm [resolvable:$true] %s20
      %s22 = sshll.u32 [#allocation5], 4
      %s23 = int_to_ptr.vmem [resolvable:$true] %s22
      %28 = dma.hbm_to_vmem [thread:$0]  %s21, 512, %s23, [#allocation6], 256, 256, 16
    $region9: #{tpu_custom_call.1} parent=1 // pred_fallthru
      _
    // Predicated region
    $region10: #{tpu_custom_call.1} parent=1 // pred_check
      _
    $region11: #{tpu_custom_call.1} parent=1 // pred_check_branch
      %30 = sbr.rel (0) target = $region13
    $region12: #{tpu_custom_call.1} parent=1 // pred_region
      %32 = vsyncadd [#allocation9], 0
      %s33 = sshll.u32 %s2, 4
      %s34 = int_to_ptr.hbm [resolvable:$true] %s33
      %s35 = sshll.u32 [#allocation8], 4
      %s36 = int_to_ptr.vmem [resolvable:$true] %s35
      %41 = dma.hbm_to_vmem [thread:$0]  %s34, 4096, %s36, [#allocation9], 256, 256, 16
    $region13: #{tpu_custom_call.1} parent=1 // pred_fallthru
      _
    // Predicated region
    $region14: #{tpu_custom_call.1} parent=1 // pred_check
      _
    $region15: #{tpu_custom_call.1} parent=1 // pred_check_branch
      %43 = sbr.rel (0) target = $region17
    $region16: #{tpu_custom_call.1} parent=1 // pred_region
      _
    $region17: #{tpu_custom_call.1} parent=1 // pred_fallthru
      _
    // Predicated region
    $region18: #{tpu_custom_call.1} parent=1 // pred_check
      _
    $region19: #{tpu_custom_call.1} parent=1 // pred_check_branch
      %45 = sbr.rel (0) target = $region21
    $region20: #{tpu_custom_call.1} parent=1 // pred_region
      _
    $region21: #{tpu_custom_call.1} parent=1 // pred_fallthru
      _
    // Predicated region
    $region22: #{tpu_custom_call.1} parent=1 // pred_check
      _
    $region23: #{tpu_custom_call.1} parent=1 // pred_check_branch
      %47 = sbr.rel (0) target = $region25
    $region24: #{tpu_custom_call.1} parent=1 // pred_region
      _
    $region25: #{tpu_custom_call.1} parent=1 // pred_fallthru
      _
    // Predicated region
    $region26: #{tpu_custom_call.1} parent=1 // pred_check
      _
    $region27: #{tpu_custom_call.1} parent=1 // pred_check_branch
      %49 = sbr.rel (0) target = $region29
    $region28: #{tpu_custom_call.1} parent=1 // pred_region
      %51 = dma.done [#allocation6], 512
    $region29: #{tpu_custom_call.1} parent=1 // pred_fallthru
      _
    // Predicated region
    $region30: #{tpu_custom_call.1} parent=1 // pred_check
      _
    $region31: #{tpu_custom_call.1} parent=1 // pred_check_branch
      %53 = sbr.rel (0) target = $region33
    $region32: #{tpu_custom_call.1} parent=1 // pred_region
      %55 = dma.done [#allocation9], 4096
    $region33: #{tpu_custom_call.1} parent=1 // pred_fallthru
      _
    %p57 = scmp.eq.s32.totalorder 0, 0
    // Predicated region
    $region34: #{tpu_custom_call.1} parent=1 // pred_check
      %p58 = pneg %p57
    $region35: #{tpu_custom_call.1} parent=1 // pred_check_branch
      %60 = sbr.rel (%p58) target = $region37
    $region36: #{tpu_custom_call.1} parent=1 // pred_region
      %61 = vst [vmem:[#allocation2] sm:$0xff] 0.0
      %62 = vst [vmem:[#allocation2 + $0x8] sm:$0xff] 0.0
      %63 = vst [vmem:[#allocation3] sm:$0xff] 0.0
      %64 = vst [vmem:[#allocation3 + $0x8] sm:$0xff] 0.0
    $region37: #{tpu_custom_call.1} parent=1 // pred_fallthru
      _
    %v65 = vld [vmem:[%s0] sm:$0xf]
    %v66 = vld [vmem:[%s0 + $0x4] sm:$0xf]
    %v67 = vld [vmem:[%s0 + $0x8] sm:$0xf]
    %v68 = vld [vmem:[%s0 + $0xc] sm:$0xf]
    %v69 = vld [vmem:[%s0 + $0x10] sm:$0xf]
    %v70 = vld [vmem:[%s0 + $0x14] sm:$0xf]
    %v71 = vld [vmem:[%s0 + $0x18] sm:$0xf]
    %v72 = vld [vmem:[%s0 + $0x1c] sm:$0xf]
    %v73 = vld [vmem:[%s0 + $0x20] sm:$0xf]
    %v74 = vld [vmem:[%s0 + $0x24] sm:$0xf]
    %v75 = vld [vmem:[%s0 + $0x28] sm:$0xf]
    %v76 = vld [vmem:[%s0 + $0x2c] sm:$0xf]
    %v77 = vld [vmem:[%s0 + $0x30] sm:$0xf]
    %v78 = vld [vmem:[%s0 + $0x34] sm:$0xf]
    %v79 = vld [vmem:[%s0 + $0x38] sm:$0xf]
    %v80 = vld [vmem:[%s0 + $0x3c] sm:$0xf]
    %v81 = vld [vmem:[#allocation5] sm:$0xff]
    %v82 = vld [vmem:[#allocation5 + $0x8] sm:$0xff]
    %v83 = vld [vmem:[#allocation5 + $0x10] sm:$0xff]
    %v84 = vld [vmem:[#allocation5 + $0x18] sm:$0xff]
    %v85 = vld [vmem:[%s3] sm:$0xf]
    %v87 = vperm.slane %v85, 0
    %v88 = vperm.slane %v85, 1
    %v89 = vperm.slane %v85, 2
    %v90 = vperm.slane %v85, 3
    %v111 = vunpack.c.l.b16 %v65
    %v112 = vunpack.c.l.b16 %v66
    %v113 = vunpack.c.l.b16 %v67
    %v114 = vunpack.c.l.b16 %v68
    %v115 = vunpack.c.l.b16 %v69
    %v116 = vunpack.c.l.b16 %v70
    %v117 = vunpack.c.l.b16 %v71
    %v118 = vunpack.c.l.b16 %v72
    %v119 = vunpack.c.l.b16 %v73
    %v120 = vunpack.c.l.b16 %v74
    %v121 = vunpack.c.l.b16 %v75
    %v122 = vunpack.c.l.b16 %v76
    %v123 = vunpack.c.l.b16 %v77
    %v124 = vunpack.c.l.b16 %v78
    %v125 = vunpack.c.l.b16 %v79
    %v126 = vunpack.c.l.b16 %v80
    %v127 = vpack.c.b16 %v112, %v111
    %v128 = vpack.c.b16 %v114, %v113
    %v129 = vpack.c.b16 %v116, %v115
    %v130 = vpack.c.b16 %v118, %v117
    %v131 = vpack.c.b16 %v120, %v119
    %v132 = vpack.c.b16 %v122, %v121
    %v133 = vpack.c.b16 %v124, %v123
    %v134 = vpack.c.b16 %v126, %v125
    %v139 = vunpack.c.l.b16 %v81
    %v140 = vunpack.c.h.b16 %v81
    %v141 = vunpack.c.l.b16 %v82
    %v142 = vunpack.c.h.b16 %v82
    %v143 = vunpack.c.l.b16 %v83
    %v144 = vunpack.c.h.b16 %v83
    %v145 = vunpack.c.l.b16 %v84
    %v146 = vunpack.c.h.b16 %v84
    %v147 = vpack.c.b16 %v143, %v139
    %v148 = vpack.c.b16 %v144, %v140
    %v149 = vpack.c.b16 %v145, %v141
    %v150 = vpack.c.b16 %v146, %v142
    %vm155 = vcmask 130048
    %v157 = vsel %vm155, %v127, 0
    %v160 = vsel %vm155, %v128, 0
    %v163 = vsel %vm155, %v129, 0
    %v166 = vsel %vm155, %v130, 0
    %v169 = vsel %vm155, %v131, 0
    %v172 = vsel %vm155, %v132, 0
    %v175 = vsel %vm155, %v133, 0
    %v178 = vsel %vm155, %v134, 0
    %180 = vmatpush.bf16.msra.mxu0 0
    %181 = vmatpush.bf16.msra.mxu0 0
    %182 = vmatpush.bf16.msra.mxu0 0
    %183 = vmatpush.bf16.msra.mxu0 0
    %184 = vmatpush.bf16.msra.mxu0 0
    %185 = vmatpush.bf16.msra.mxu0 0
    %186 = vmatpush.bf16.msra.mxu0 0
    %187 = vmatpush.bf16.msra.mxu0 %v147
    %188 = vmatmul.bf16.gmra.mxu0 %v157
    %v189 = vpop.f32.mrf.mxu0
    %v190 = vadd.f32 %v87, %v189
    %v191 = vpop.f32.mrf.mxu0
    %v192 = vadd.f32 %v87, %v191
    %193 = vmatmul.bf16.gmra.mxu0 %v160
    %v194 = vpop.f32.mrf.mxu0
    %v195 = vadd.f32 %v87, %v194
    %v196 = vpop.f32.mrf.mxu0
    %v197 = vadd.f32 %v87, %v196
    %198 = vmatmul.bf16.gmra.mxu0 %v163
    %v199 = vpop.f32.mrf.mxu0
    %v200 = vadd.f32 %v87, %v199
    %v201 = vpop.f32.mrf.mxu0
    %v202 = vadd.f32 %v87, %v201
    %203 = vmatmul.bf16.gmra.mxu0 %v166
    %v204 = vpop.f32.mrf.mxu0
    %v205 = vadd.f32 %v87, %v204
    %v206 = vpop.f32.mrf.mxu0
    %v207 = vadd.f32 %v87, %v206
    %208 = vmatmul.bf16.gmra.mxu0 %v169
    %v209 = vpop.f32.mrf.mxu0
    %v210 = vadd.f32 %v87, %v209
    %v211 = vpop.f32.mrf.mxu0
    %v212 = vadd.f32 %v87, %v211
    %213 = vmatmul.bf16.gmra.mxu0 %v172
    %v214 = vpop.f32.mrf.mxu0
    %v215 = vadd.f32 %v87, %v214
    %v216 = vpop.f32.mrf.mxu0
    %v217 = vadd.f32 %v87, %v216
    %218 = vmatmul.bf16.gmra.mxu0 %v175
    %v219 = vpop.f32.mrf.mxu0
    %v220 = vadd.f32 %v87, %v219
    %v221 = vpop.f32.mrf.mxu0
    %v222 = vadd.f32 %v87, %v221
    %223 = vmatmul.bf16.gmra.mxu0 %v178
    %v224 = vpop.f32.mrf.mxu0
    %v225 = vadd.f32 %v87, %v224
    %v226 = vpop.f32.mrf.mxu0
    %v227 = vadd.f32 %v87, %v226
    %228 = vdwg.mxu0
    %229 = vmatpush.bf16.msra.mxu0 0
    %230 = vmatpush.bf16.msra.mxu0 0
    %231 = vmatpush.bf16.msra.mxu0 0
    %232 = vmatpush.bf16.msra.mxu0 0
    %233 = vmatpush.bf16.msra.mxu0 0
    %234 = vmatpush.bf16.msra.mxu0 0
    %235 = vmatpush.bf16.msra.mxu0 0
    %236 = vmatpush.bf16.msra.mxu0 %v148
    %237 = vmatmul.bf16.gmra.mxu0 %v157
    %v238 = vpop.f32.mrf.mxu0
    %v239 = vadd.f32 %v88, %v238
    %v240 = vpop.f32.mrf.mxu0
    %v241 = vadd.f32 %v88, %v240
    %242 = vmatmul.bf16.gmra.mxu0 %v160
    %v243 = vpop.f32.mrf.mxu0
    %v244 = vadd.f32 %v88, %v243
    %v245 = vpop.f32.mrf.mxu0
    %v246 = vadd.f32 %v88, %v245
    %247 = vmatmul.bf16.gmra.mxu0 %v163
    %v248 = vpop.f32.mrf.mxu0
    %v249 = vadd.f32 %v88, %v248
    %v250 = vpop.f32.mrf.mxu0
    %v251 = vadd.f32 %v88, %v250
    %252 = vmatmul.bf16.gmra.mxu0 %v166
    %v253 = vpop.f32.mrf.mxu0
    %v254 = vadd.f32 %v88, %v253
    %v255 = vpop.f32.mrf.mxu0
    %v256 = vadd.f32 %v88, %v255
    %257 = vmatmul.bf16.gmra.mxu0 %v169
    %v258 = vpop.f32.mrf.mxu0
    %v259 = vadd.f32 %v88, %v258
    %v260 = vpop.f32.mrf.mxu0
    %v261 = vadd.f32 %v88, %v260
    %262 = vmatmul.bf16.gmra.mxu0 %v172
    %v263 = vpop.f32.mrf.mxu0
    %v264 = vadd.f32 %v88, %v263
    %v265 = vpop.f32.mrf.mxu0
    %v266 = vadd.f32 %v88, %v265
    %267 = vmatmul.bf16.gmra.mxu0 %v175
    %v268 = vpop.f32.mrf.mxu0
    %v269 = vadd.f32 %v88, %v268
    %v270 = vpop.f32.mrf.mxu0
    %v271 = vadd.f32 %v88, %v270
    %272 = vmatmul.bf16.gmra.mxu0 %v178
    %v273 = vpop.f32.mrf.mxu0
    %v274 = vadd.f32 %v88, %v273
    %v275 = vpop.f32.mrf.mxu0
    %v276 = vadd.f32 %v88, %v275
    %277 = vdwg.mxu0
    %278 = vmatpush.bf16.msra.mxu0 0
    %279 = vmatpush.bf16.msra.mxu0 0
    %280 = vmatpush.bf16.msra.mxu0 0
    %281 = vmatpush.bf16.msra.mxu0 0
    %282 = vmatpush.bf16.msra.mxu0 0
    %283 = vmatpush.bf16.msra.mxu0 0
    %284 = vmatpush.bf16.msra.mxu0 0
    %285 = vmatpush.bf16.msra.mxu0 %v149
    %286 = vmatmul.bf16.gmra.mxu0 %v157
    %v287 = vpop.f32.mrf.mxu0
    %v288 = vadd.f32 %v89, %v287
    %v289 = vpop.f32.mrf.mxu0
    %v290 = vadd.f32 %v89, %v289
    %291 = vmatmul.bf16.gmra.mxu0 %v160
    %v292 = vpop.f32.mrf.mxu0
    %v293 = vadd.f32 %v89, %v292
    %v294 = vpop.f32.mrf.mxu0
    %v295 = vadd.f32 %v89, %v294
    %296 = vmatmul.bf16.gmra.mxu0 %v163
    %v297 = vpop.f32.mrf.mxu0
    %v298 = vadd.f32 %v89, %v297
    %v299 = vpop.f32.mrf.mxu0
    %v300 = vadd.f32 %v89, %v299
    %301 = vmatmul.bf16.gmra.mxu0 %v166
    %v302 = vpop.f32.mrf.mxu0
    %v303 = vadd.f32 %v89, %v302
    %v304 = vpop.f32.mrf.mxu0
    %v305 = vadd.f32 %v89, %v304
    %306 = vmatmul.bf16.gmra.mxu0 %v169
    %v307 = vpop.f32.mrf.mxu0
    %v308 = vadd.f32 %v89, %v307
    %v309 = vpop.f32.mrf.mxu0
    %v310 = vadd.f32 %v89, %v309
    %311 = vmatmul.bf16.gmra.mxu0 %v172
    %v312 = vpop.f32.mrf.mxu0
    %v313 = vadd.f32 %v89, %v312
    %v314 = vpop.f32.mrf.mxu0
    %v315 = vadd.f32 %v89, %v314
    %316 = vmatmul.bf16.gmra.mxu0 %v175
    %v317 = vpop.f32.mrf.mxu0
    %v318 = vadd.f32 %v89, %v317
    %v319 = vpop.f32.mrf.mxu0
    %v320 = vadd.f32 %v89, %v319
    %321 = vmatmul.bf16.gmra.mxu0 %v178
    %v322 = vpop.f32.mrf.mxu0
    %v323 = vadd.f32 %v89, %v322
    %v324 = vpop.f32.mrf.mxu0
    %v325 = vadd.f32 %v89, %v324
    %326 = vdwg.mxu0
    %327 = vmatpush.bf16.msra.mxu0 0
    %328 = vmatpush.bf16.msra.mxu0 0
    %329 = vmatpush.bf16.msra.mxu0 0
    %330 = vmatpush.bf16.msra.mxu0 0
    %331 = vmatpush.bf16.msra.mxu0 0
    %332 = vmatpush.bf16.msra.mxu0 0
    %333 = vmatpush.bf16.msra.mxu0 0
    %334 = vmatpush.bf16.msra.mxu0 %v150
    %335 = vmatmul.bf16.gmra.mxu0 %v157
    %v336 = vpop.f32.mrf.mxu0
    %v337 = vadd.f32 %v90, %v336
    %v338 = vpop.f32.mrf.mxu0
    %v339 = vadd.f32 %v90, %v338
    %340 = vmatmul.bf16.gmra.mxu0 %v160
    %v341 = vpop.f32.mrf.mxu0
    %v342 = vadd.f32 %v90, %v341
    %v343 = vpop.f32.mrf.mxu0
    %v344 = vadd.f32 %v90, %v343
    %345 = vmatmul.bf16.gmra.mxu0 %v163
    %v346 = vpop.f32.mrf.mxu0
    %v347 = vadd.f32 %v90, %v346
    %v348 = vpop.f32.mrf.mxu0
    %v349 = vadd.f32 %v90, %v348
    %350 = vmatmul.bf16.gmra.mxu0 %v166
    %v351 = vpop.f32.mrf.mxu0
    %v352 = vadd.f32 %v90, %v351
    %v353 = vpop.f32.mrf.mxu0
    %v354 = vadd.f32 %v90, %v353
    %355 = vmatmul.bf16.gmra.mxu0 %v169
    %v356 = vpop.f32.mrf.mxu0
    %v357 = vadd.f32 %v90, %v356
    %v358 = vpop.f32.mrf.mxu0
    %v359 = vadd.f32 %v90, %v358
    %360 = vmatmul.bf16.gmra.mxu0 %v172
    %v361 = vpop.f32.mrf.mxu0
    %v362 = vadd.f32 %v90, %v361
    %v363 = vpop.f32.mrf.mxu0
    %v364 = vadd.f32 %v90, %v363
    %365 = vmatmul.bf16.gmra.mxu0 %v175
    %v366 = vpop.f32.mrf.mxu0
    %v367 = vadd.f32 %v90, %v366
    %v368 = vpop.f32.mrf.mxu0
    %v369 = vadd.f32 %v90, %v368
    %370 = vmatmul.bf16.gmra.mxu0 %v178
    %v371 = vpop.f32.mrf.mxu0
    %v372 = vadd.f32 %v90, %v371
    %v373 = vpop.f32.mrf.mxu0
    %v374 = vadd.f32 %v90, %v373
    %375 = vdwg.mxu0
    %v376 = vpack.c.bf16 %v239, %v190
    %v377 = vpack.c.bf16 %v337, %v288
    %v378 = vpack.c.bf16 %v241, %v192
    %v379 = vpack.c.bf16 %v339, %v290
    %v380 = vpack.c.bf16 %v244, %v195
    %v381 = vpack.c.bf16 %v342, %v293
    %v382 = vpack.c.bf16 %v246, %v197
    %v383 = vpack.c.bf16 %v344, %v295
    %v384 = vpack.c.bf16 %v249, %v200
    %v385 = vpack.c.bf16 %v347, %v298
    %v386 = vpack.c.bf16 %v251, %v202
    %v387 = vpack.c.bf16 %v349, %v300
    %v388 = vpack.c.bf16 %v254, %v205
    %v389 = vpack.c.bf16 %v352, %v303
    %v390 = vpack.c.bf16 %v256, %v207
    %v391 = vpack.c.bf16 %v354, %v305
    %v392 = vpack.c.bf16 %v259, %v210
    %v393 = vpack.c.bf16 %v357, %v308
    %v394 = vpack.c.bf16 %v261, %v212
    %v395 = vpack.c.bf16 %v359, %v310
    %v396 = vpack.c.bf16 %v264, %v215
    %v397 = vpack.c.bf16 %v362, %v313
    %v398 = vpack.c.bf16 %v266, %v217
    %v399 = vpack.c.bf16 %v364, %v315
    %v400 = vpack.c.bf16 %v269, %v220
    %v401 = vpack.c.bf16 %v367, %v318
    %v402 = vpack.c.bf16 %v271, %v222
    %v403 = vpack.c.bf16 %v369, %v320
    %v404 = vpack.c.bf16 %v274, %v225
    %v405 = vpack.c.bf16 %v372, %v323
    %v406 = vpack.c.bf16 %v276, %v227
    %v407 = vpack.c.bf16 %v374, %v325
    %408 = vst [vmem:[#allocation4] sm:$0xff] %v376
    %409 = vst [vmem:[#allocation4 + $0x8] sm:$0xff] %v377
    %410 = vst [vmem:[#allocation4 + $0x10] sm:$0xff] %v378
    %411 = vst [vmem:[#allocation4 + $0x18] sm:$0xff] %v379
    %412 = vst [vmem:[#allocation4 + $0x20] sm:$0xff] %v380
    %413 = vst [vmem:[#allocation4 + $0x28] sm:$0xff] %v381
    %414 = vst [vmem:[#allocation4 + $0x30] sm:$0xff] %v382
    %415 = vst [vmem:[#allocation4 + $0x38] sm:$0xff] %v383
    %416 = vst [vmem:[#allocation4 + $0x40] sm:$0xff] %v384
    %417 = vst [vmem:[#allocation4 + $0x48] sm:$0xff] %v385
    %418 = vst [vmem:[#allocation4 + $0x50] sm:$0xff] %v386
    %419 = vst [vmem:[#allocation4 + $0x58] sm:$0xff] %v387
    %420 = vst [vmem:[#allocation4 + $0x60] sm:$0xff] %v388
    %421 = vst [vmem:[#allocation4 + $0x68] sm:$0xff] %v389
    %422 = vst [vmem:[#allocation4 + $0x70] sm:$0xff] %v390
    %423 = vst [vmem:[#allocation4 + $0x78] sm:$0xff] %v391
    %424 = vst [vmem:[#allocation4 + $0x80] sm:$0xff] %v392
    %425 = vst [vmem:[#allocation4 + $0x88] sm:$0xff] %v393
    %426 = vst [vmem:[#allocation4 + $0x90] sm:$0xff] %v394
    %427 = vst [vmem:[#allocation4 + $0x98] sm:$0xff] %v395
    %428 = vst [vmem:[#allocation4 + $0xa0] sm:$0xff] %v396
    %429 = vst [vmem:[#allocation4 + $0xa8] sm:$0xff] %v397
    %430 = vst [vmem:[#allocation4 + $0xb0] sm:$0xff] %v398
    %431 = vst [vmem:[#allocation4 + $0xb8] sm:$0xff] %v399
    %432 = vst [vmem:[#allocation4 + $0xc0] sm:$0xff] %v400
    %433 = vst [vmem:[#allocation4 + $0xc8] sm:$0xff] %v401
    %434 = vst [vmem:[#allocation4 + $0xd0] sm:$0xff] %v402
    %435 = vst [vmem:[#allocation4 + $0xd8] sm:$0xff] %v403
    %436 = vst [vmem:[#allocation4 + $0xe0] sm:$0xff] %v404
    %437 = vst [vmem:[#allocation4 + $0xe8] sm:$0xff] %v405
    %438 = vst [vmem:[#allocation4 + $0xf0] sm:$0xff] %v406
    %439 = vst [vmem:[#allocation4 + $0xf8] sm:$0xff] %v407
    %v440 = vld [vmem:[#allocation2] sm:$0xff]
    %v441 = vld [vmem:[#allocation2 + $0x8] sm:$0xff]
    %v442 = vld [vmem:[#allocation3] sm:$0xff]
    %v443 = vld [vmem:[#allocation3 + $0x8] sm:$0xff]
    %s444 = smul.u32 0, 4
    %s445 = smul.addr %s444, 4
    %s446 = scalar_lea.vmem [#allocation4], %s445
    %v447 = vld [vmem:[%s446] sm:$0xff]
    %v448 = vld [vmem:[%s446 + $0x8] sm:$0xff]
    %v449 = vld [vmem:[%s446 + $0x10] sm:$0xff]
    %v450 = vld [vmem:[%s446 + $0x18] sm:$0xff]
    %v451 = vunpack.c.l.bf16 %v447
    %v452 = vunpack.c.h.bf16 %v447
    %v453 = vunpack.c.l.bf16 %v448
    %v454 = vunpack.c.h.bf16 %v448
    %v455 = vunpack.c.l.bf16 %v449
    %v456 = vunpack.c.h.bf16 %v449
    %v457 = vunpack.c.l.bf16 %v450
    %v458 = vunpack.c.h.bf16 %v450
    %v459 = vpack.c.bf16 %v441, %v440
    %v460 = vld [vmem:[#allocation8] sm:$0xff]
    %v461 = vld [vmem:[#allocation8 + $0x8] sm:$0xff]
    %v462 = vld [vmem:[#allocation8 + $0x10] sm:$0xff]
    %v463 = vld [vmem:[#allocation8 + $0x18] sm:$0xff]
    %v464 = vld [vmem:[#allocation8 + $0x20] sm:$0xff]
    %v465 = vld [vmem:[#allocation8 + $0x28] sm:$0xff]
    %v466 = vld [vmem:[#allocation8 + $0x30] sm:$0xff]
    %v467 = vld [vmem:[#allocation8 + $0x38] sm:$0xff]
    %v468 = vld [vmem:[#allocation8 + $0x40] sm:$0xff]
    %v469 = vld [vmem:[#allocation8 + $0x48] sm:$0xff]
    %v470 = vld [vmem:[#allocation8 + $0x50] sm:$0xff]
    %v471 = vld [vmem:[#allocation8 + $0x58] sm:$0xff]
    %v472 = vld [vmem:[#allocation8 + $0x60] sm:$0xff]
    %v473 = vld [vmem:[#allocation8 + $0x68] sm:$0xff]
    %v474 = vld [vmem:[#allocation8 + $0x70] sm:$0xff]
    %v475 = vld [vmem:[#allocation8 + $0x78] sm:$0xff]
    %v476 = vld [vmem:[#allocation8 + $0x80] sm:$0xff]
    %v477 = vld [vmem:[#allocation8 + $0x88] sm:$0xff]
    %v478 = vld [vmem:[#allocation8 + $0x90] sm:$0xff]
    %v479 = vld [vmem:[#allocation8 + $0x98] sm:$0xff]
    %v480 = vld [vmem:[#allocation8 + $0xa0] sm:$0xff]
    %v481 = vld [vmem:[#allocation8 + $0xa8] sm:$0xff]
    %v482 = vld [vmem:[#allocation8 + $0xb0] sm:$0xff]
    %v483 = vld [vmem:[#allocation8 + $0xb8] sm:$0xff]
    %v484 = vld [vmem:[#allocation8 + $0xc0] sm:$0xff]
    %v485 = vld [vmem:[#allocation8 + $0xc8] sm:$0xff]
    %v486 = vld [vmem:[#allocation8 + $0xd0] sm:$0xff]
    %v487 = vld [vmem:[#allocation8 + $0xd8] sm:$0xff]
    %v488 = vld [vmem:[#allocation8 + $0xe0] sm:$0xff]
    %v489 = vld [vmem:[#allocation8 + $0xe8] sm:$0xff]
    %v490 = vld [vmem:[#allocation8 + $0xf0] sm:$0xff]
    %v491 = vld [vmem:[#allocation8 + $0xf8] sm:$0xff]
    %v524 = vunpack.c.l.b16 %v460
    %v525 = vunpack.c.h.b16 %v460
    %v526 = vunpack.c.l.b16 %v461
    %v527 = vunpack.c.h.b16 %v461
    %v528 = vunpack.c.l.b16 %v462
    %v529 = vunpack.c.h.b16 %v462
    %v530 = vunpack.c.l.b16 %v463
    %v531 = vunpack.c.h.b16 %v463
    %v532 = vunpack.c.l.b16 %v464
    %v533 = vunpack.c.h.b16 %v464
    %v534 = vunpack.c.l.b16 %v465
    %v535 = vunpack.c.h.b16 %v465
    %v536 = vunpack.c.l.b16 %v466
    %v537 = vunpack.c.h.b16 %v466
    %v538 = vunpack.c.l.b16 %v467
    %v539 = vunpack.c.h.b16 %v467
    %v540 = vunpack.c.l.b16 %v468
    %v541 = vunpack.c.h.b16 %v468
    %v542 = vunpack.c.l.b16 %v469
    %v543 = vunpack.c.h.b16 %v469
    %v544 = vunpack.c.l.b16 %v470
    %v545 = vunpack.c.h.b16 %v470
    %v546 = vunpack.c.l.b16 %v471
    %v547 = vunpack.c.h.b16 %v471
    %v548 = vunpack.c.l.b16 %v472
    %v549 = vunpack.c.h.b16 %v472
    %v550 = vunpack.c.l.b16 %v473
    %v551 = vunpack.c.h.b16 %v473
    %v552 = vunpack.c.l.b16 %v474
    %v553 = vunpack.c.h.b16 %v474
    %v554 = vunpack.c.l.b16 %v475
    %v555 = vunpack.c.h.b16 %v475
    %v556 = vunpack.c.l.b16 %v476
    %v557 = vunpack.c.h.b16 %v476
    %v558 = vunpack.c.l.b16 %v477
    %v559 = vunpack.c.h.b16 %v477
    %v560 = vunpack.c.l.b16 %v478
    %v561 = vunpack.c.h.b16 %v478
    %v562 = vunpack.c.l.b16 %v479
    %v563 = vunpack.c.h.b16 %v479
    %v564 = vunpack.c.l.b16 %v480
    %v565 = vunpack.c.h.b16 %v480
    %v566 = vunpack.c.l.b16 %v481
    %v567 = vunpack.c.h.b16 %v481
    %v568 = vunpack.c.l.b16 %v482
    %v569 = vunpack.c.h.b16 %v482
    %v570 = vunpack.c.l.b16 %v483
    %v571 = vunpack.c.h.b16 %v483
    %v572 = vunpack.c.l.b16 %v484
    %v573 = vunpack.c.h.b16 %v484
    %v574 = vunpack.c.l.b16 %v485
    %v575 = vunpack.c.h.b16 %v485
    %v576 = vunpack.c.l.b16 %v486
    %v577 = vunpack.c.h.b16 %v486
    %v578 = vunpack.c.l.b16 %v487
    %v579 = vunpack.c.h.b16 %v487
    %v580 = vunpack.c.l.b16 %v488
    %v581 = vunpack.c.h.b16 %v488
    %v582 = vunpack.c.l.b16 %v489
    %v583 = vunpack.c.h.b16 %v489
    %v584 = vunpack.c.l.b16 %v490
    %v585 = vunpack.c.h.b16 %v490
    %v586 = vunpack.c.l.b16 %v491
    %v587 = vunpack.c.h.b16 %v491
    %v588 = vpack.c.b16 %v528, %v524
    %v589 = vpack.c.b16 %v529, %v525
    %v590 = vpack.c.b16 %v530, %v526
    %v591 = vpack.c.b16 %v531, %v527
    %v592 = vpack.c.b16 %v536, %v532
    %v593 = vpack.c.b16 %v537, %v533
    %v594 = vpack.c.b16 %v538, %v534
    %v595 = vpack.c.b16 %v539, %v535
    %v596 = vpack.c.b16 %v544, %v540
    %v597 = vpack.c.b16 %v545, %v541
    %v598 = vpack.c.b16 %v546, %v542
    %v599 = vpack.c.b16 %v547, %v543
    %v600 = vpack.c.b16 %v552, %v548
    %v601 = vpack.c.b16 %v553, %v549
    %v602 = vpack.c.b16 %v554, %v550
    %v603 = vpack.c.b16 %v555, %v551
    %v604 = vpack.c.b16 %v560, %v556
    %v605 = vpack.c.b16 %v561, %v557
    %v606 = vpack.c.b16 %v562, %v558
    %v607 = vpack.c.b16 %v563, %v559
    %v608 = vpack.c.b16 %v568, %v564
    %v609 = vpack.c.b16 %v569, %v565
    %v610 = vpack.c.b16 %v570, %v566
    %v611 = vpack.c.b16 %v571, %v567
    %v612 = vpack.c.b16 %v576, %v572
    %v613 = vpack.c.b16 %v577, %v573
    %v614 = vpack.c.b16 %v578, %v574
    %v615 = vpack.c.b16 %v579, %v575
    %v616 = vpack.c.b16 %v584, %v580
    %v617 = vpack.c.b16 %v585, %v581
    %v618 = vpack.c.b16 %v586, %v582
    %v619 = vpack.c.b16 %v587, %v583
    %652 = vmatpush.bf16.msra.mxu0 %v616
    %653 = vmatpush.bf16.msra.mxu0 %v612
    %654 = vmatpush.bf16.msra.mxu0 %v608
    %655 = vmatpush.bf16.msra.mxu0 %v604
    %656 = vmatpush.bf16.msra.mxu0 %v600
    %657 = vmatpush.bf16.msra.mxu0 %v596
    %658 = vmatpush.bf16.msra.mxu0 %v592
    %659 = vmatpush.bf16.msra.mxu0 %v588
    %660 = vmatmul.bf16.gmra.mxu0 %v459
    %v661 = vpop.f32.mrf.mxu0
    %v662 = vadd.f32 0.0, %v661
    %v663 = vpop.f32.mrf.mxu0
    %v664 = vadd.f32 0.0, %v663
    %665 = vdwg.mxu0
    %666 = vmatpush.bf16.msra.mxu0 %v617
    %667 = vmatpush.bf16.msra.mxu0 %v613
    %668 = vmatpush.bf16.msra.mxu0 %v609
    %669 = vmatpush.bf16.msra.mxu0 %v605
    %670 = vmatpush.bf16.msra.mxu0 %v601
    %671 = vmatpush.bf16.msra.mxu0 %v597
    %672 = vmatpush.bf16.msra.mxu0 %v593
    %673 = vmatpush.bf16.msra.mxu0 %v589
    %674 = vmatmul.bf16.gmra.mxu0 %v459
    %v675 = vpop.f32.mrf.mxu0
    %v676 = vadd.f32 0.0, %v675
    %v677 = vpop.f32.mrf.mxu0
    %v678 = vadd.f32 0.0, %v677
    %679 = vdwg.mxu0
    %680 = vmatpush.bf16.msra.mxu0 %v618
    %681 = vmatpush.bf16.msra.mxu0 %v614
    %682 = vmatpush.bf16.msra.mxu0 %v610
    %683 = vmatpush.bf16.msra.mxu0 %v606
    %684 = vmatpush.bf16.msra.mxu0 %v602
    %685 = vmatpush.bf16.msra.mxu0 %v598
    %686 = vmatpush.bf16.msra.mxu0 %v594
    %687 = vmatpush.bf16.msra.mxu0 %v590
    %688 = vmatmul.bf16.gmra.mxu0 %v459
    %v689 = vpop.f32.mrf.mxu0
    %v690 = vadd.f32 0.0, %v689
    %v691 = vpop.f32.mrf.mxu0
    %v692 = vadd.f32 0.0, %v691
    %693 = vdwg.mxu0
    %694 = vmatpush.bf16.msra.mxu0 %v619
    %695 = vmatpush.bf16.msra.mxu0 %v615
    %696 = vmatpush.bf16.msra.mxu0 %v611
    %697 = vmatpush.bf16.msra.mxu0 %v607
    %698 = vmatpush.bf16.msra.mxu0 %v603
    %699 = vmatpush.bf16.msra.mxu0 %v599
    %700 = vmatpush.bf16.msra.mxu0 %v595
    %701 = vmatpush.bf16.msra.mxu0 %v591
    %702 = vmatmul.bf16.gmra.mxu0 %v459
    %v703 = vpop.f32.mrf.mxu0
    %v704 = vadd.f32 0.0, %v703
    %v705 = vpop.f32.mrf.mxu0
    %v706 = vadd.f32 0.0, %v705
    %707 = vdwg.mxu0
    %v708 = vadd.f32 %v451, %v662
    %v709 = vadd.f32 %v452, %v676
    %v710 = vadd.f32 %v453, %v690
    %v711 = vadd.f32 %v454, %v704
    %v712 = vadd.f32 %v455, %v664
    %v713 = vadd.f32 %v456, %v678
    %v714 = vadd.f32 %v457, %v692
    %v715 = vadd.f32 %v458, %v706
    %v716 = vxor.u32 %v708, 2147483648
    %v717 = vxor.u32 %v709, 2147483648
    %v718 = vxor.u32 %v710, 2147483648
    %v719 = vxor.u32 %v712, 2147483648
    %v720 = vxor.u32 %v713, 2147483648
    %v721 = vxor.u32 %v714, 2147483648
    %v722 = vmul.f32 %v716, 1.442695
    %v723 = vpow.pop %v722
    %v724 = vmul.f32 %v717, 1.442695
    %v725 = vpow.pop %v724
    %v726 = vmul.f32 %v718, 1.442695
    %v727 = vpow.pop %v726
    %v728 = vmul.f32 %v719, 1.442695
    %v729 = vpow.pop %v728
    %v730 = vmul.f32 %v720, 1.442695
    %v731 = vpow.pop %v730
    %v732 = vmul.f32 %v721, 1.442695
    %v733 = vpow.pop %v732
    %v734 = vadd.f32 %v723, 1.0
    %v735 = vadd.f32 %v725, 1.0
    %v736 = vadd.f32 %v727, 1.0
    %v737 = vadd.f32 %v729, 1.0
    %v738 = vadd.f32 %v731, 1.0
    %v739 = vadd.f32 %v733, 1.0
    %v740 = vrcp.pop %v734
    %v741 = vmul.f32 %v734, %v740
    %v742 = vsub.f32 1.0, %v741
    %v743 = vmul.f32 %v740, %v742
    %v744 = vadd.f32 %v740, %v743
    %vm745 = vweird.f32 %v734
    %vm746 = vweird.f32 %v740
    %vm747 = vmor %vm745, %vm746
    %v748 = vsel %vm747, %v740, %v744
    %v749 = vand.u32 2147483647, %v734
    %vm750 = vcmp.eq.f32.partialorder %v749, 8.507059e+37
    %v751 = vand.u32 %v734, 2147483648
    %v752 = vor.u32 1.1754944e-38, %v751
    %v753 = vsel %vm750, %v752, %v748
    %v754 = vmul.f32 1.0, %v753
    %v755 = vrcp.pop %v735
    %v756 = vmul.f32 %v735, %v755
    %v757 = vsub.f32 1.0, %v756
    %v758 = vmul.f32 %v755, %v757
    %v759 = vadd.f32 %v755, %v758
    %vm760 = vweird.f32 %v735
    %vm761 = vweird.f32 %v755
    %vm762 = vmor %vm760, %vm761
    %v763 = vsel %vm762, %v755, %v759
    %v764 = vand.u32 2147483647, %v735
    %vm765 = vcmp.eq.f32.partialorder %v764, 8.507059e+37
    %v766 = vand.u32 %v735, 2147483648
    %v767 = vor.u32 1.1754944e-38, %v766
    %v768 = vsel %vm765, %v767, %v763
    %v769 = vmul.f32 1.0, %v768
    %v770 = vrcp.pop %v736
    %v771 = vmul.f32 %v736, %v770
    %v772 = vsub.f32 1.0, %v771
    %v773 = vmul.f32 %v770, %v772
    %v774 = vadd.f32 %v770, %v773
    %vm775 = vweird.f32 %v736
    %vm776 = vweird.f32 %v770
    %vm777 = vmor %vm775, %vm776
    %v778 = vsel %vm777, %v770, %v774
    %v779 = vand.u32 2147483647, %v736
    %vm780 = vcmp.eq.f32.partialorder %v779, 8.507059e+37
    %v781 = vand.u32 %v736, 2147483648
    %v782 = vor.u32 1.1754944e-38, %v781
    %v783 = vsel %vm780, %v782, %v778
    %v784 = vmul.f32 1.0, %v783
    %v785 = vrcp.pop %v737
    %v786 = vmul.f32 %v737, %v785
    %v787 = vsub.f32 1.0, %v786
    %v788 = vmul.f32 %v785, %v787
    %v789 = vadd.f32 %v785, %v788
    %vm790 = vweird.f32 %v737
    %vm791 = vweird.f32 %v785
    %vm792 = vmor %vm790, %vm791
    %v793 = vsel %vm792, %v785, %v789
    %v794 = vand.u32 2147483647, %v737
    %vm795 = vcmp.eq.f32.partialorder %v794, 8.507059e+37
    %v796 = vand.u32 %v737, 2147483648
    %v797 = vor.u32 1.1754944e-38, %v796
    %v798 = vsel %vm795, %v797, %v793
    %v799 = vmul.f32 1.0, %v798
    %v800 = vrcp.pop %v738
    %v801 = vmul.f32 %v738, %v800
    %v802 = vsub.f32 1.0, %v801
    %v803 = vmul.f32 %v800, %v802
    %v804 = vadd.f32 %v800, %v803
    %vm805 = vweird.f32 %v738
    %vm806 = vweird.f32 %v800
    %vm807 = vmor %vm805, %vm806
    %v808 = vsel %vm807, %v800, %v804
    %v809 = vand.u32 2147483647, %v738
    %vm810 = vcmp.eq.f32.partialorder %v809, 8.507059e+37
    %v811 = vand.u32 %v738, 2147483648
    %v812 = vor.u32 1.1754944e-38, %v811
    %v813 = vsel %vm810, %v812, %v808
    %v814 = vmul.f32 1.0, %v813
    %v815 = vrcp.pop %v739
    %v816 = vmul.f32 %v739, %v815
    %v817 = vsub.f32 1.0, %v816
    %v818 = vmul.f32 %v815, %v817
    %v819 = vadd.f32 %v815, %v818
    %vm820 = vweird.f32 %v739
    %vm821 = vweird.f32 %v815
    %vm822 = vmor %vm820, %vm821
    %v823 = vsel %vm822, %v815, %v819
    %v824 = vand.u32 2147483647, %v739
    %vm825 = vcmp.eq.f32.partialorder %v824, 8.507059e+37
    %v826 = vand.u32 %v739, 2147483648
    %v827 = vor.u32 1.1754944e-38, %v826
    %v828 = vsel %vm825, %v827, %v823
    %v829 = vmul.f32 1.0, %v828
    %v830 = vtanh.pop %v711
    %v831 = vtanh.pop %v715
    %v832 = vmul.f32 %v769, %v442
    %v833 = vmul.f32 %v814, %v443
    %v834 = vmul.f32 %v754, %v830
    %v835 = vmul.f32 %v799, %v831
    %v836 = vadd.f32 %v832, %v834
    %v837 = vadd.f32 %v833, %v835
    %v838 = vtanh.pop %v836
    %v839 = vtanh.pop %v837
    %v840 = vmul.f32 %v784, %v838
    %v841 = vmul.f32 %v829, %v839
    %s842 = smul.u32 2, 4
    %s843 = smul.addr %s842, 4
    %s844 = scalar_lea.vmem [#allocation4], %s843
    %v845 = vld [vmem:[%s844] sm:$0xff]
    %v846 = vld [vmem:[%s844 + $0x8] sm:$0xff]
    %v847 = vld [vmem:[%s844 + $0x10] sm:$0xff]
    %v848 = vld [vmem:[%s844 + $0x18] sm:$0xff]
    %v849 = vunpack.c.l.bf16 %v845
    %v850 = vunpack.c.h.bf16 %v845
    %v851 = vunpack.c.l.bf16 %v846
    %v852 = vunpack.c.h.bf16 %v846
    %v853 = vunpack.c.l.bf16 %v847
    %v854 = vunpack.c.h.bf16 %v847
    %v855 = vunpack.c.l.bf16 %v848
    %v856 = vunpack.c.h.bf16 %v848
    %v857 = vpack.c.bf16 %v841, %v840
    %858 = vmatpush.bf16.msra.mxu0 %v616
    %859 = vmatpush.bf16.msra.mxu0 %v612
    %860 = vmatpush.bf16.msra.mxu0 %v608
    %861 = vmatpush.bf16.msra.mxu0 %v604
    %862 = vmatpush.bf16.msra.mxu0 %v600
    %863 = vmatpush.bf16.msra.mxu0 %v596
    %864 = vmatpush.bf16.msra.mxu0 %v592
    %865 = vmatpush.bf16.msra.mxu0 %v588
    %866 = vmatmul.bf16.gmra.mxu0 %v857
    %v867 = vpop.f32.mrf.mxu0
    %v868 = vadd.f32 0.0, %v867
    %v869 = vpop.f32.mrf.mxu0
    %v870 = vadd.f32 0.0, %v869
    %871 = vdwg.mxu0
    %872 = vmatpush.bf16.msra.mxu0 %v617
    %873 = vmatpush.bf16.msra.mxu0 %v613
    %874 = vmatpush.bf16.msra.mxu0 %v609
    %875 = vmatpush.bf16.msra.mxu0 %v605
    %876 = vmatpush.bf16.msra.mxu0 %v601
    %877 = vmatpush.bf16.msra.mxu0 %v597
    %878 = vmatpush.bf16.msra.mxu0 %v593
    %879 = vmatpush.bf16.msra.mxu0 %v589
    %880 = vmatmul.bf16.gmra.mxu0 %v857
    %v881 = vpop.f32.mrf.mxu0
    %v882 = vadd.f32 0.0, %v881
    %v883 = vpop.f32.mrf.mxu0
    %v884 = vadd.f32 0.0, %v883
    %885 = vdwg.mxu0
    %886 = vmatpush.bf16.msra.mxu0 %v618
    %887 = vmatpush.bf16.msra.mxu0 %v614
    %888 = vmatpush.bf16.msra.mxu0 %v610
    %889 = vmatpush.bf16.msra.mxu0 %v606
    %890 = vmatpush.bf16.msra.mxu0 %v602
    %891 = vmatpush.bf16.msra.mxu0 %v598
    %892 = vmatpush.bf16.msra.mxu0 %v594
    %893 = vmatpush.bf16.msra.mxu0 %v590
    %894 = vmatmul.bf16.gmra.mxu0 %v857
    %v895 = vpop.f32.mrf.mxu0
    %v896 = vadd.f32 0.0, %v895
    %v897 = vpop.f32.mrf.mxu0
    %v898 = vadd.f32 0.0, %v897
    %899 = vdwg.mxu0
    %900 = vmatpush.bf16.msra.mxu0 %v619
    %901 = vmatpush.bf16.msra.mxu0 %v615
    %902 = vmatpush.bf16.msra.mxu0 %v611
    %903 = vmatpush.bf16.msra.mxu0 %v607
    %904 = vmatpush.bf16.msra.mxu0 %v603
    %905 = vmatpush.bf16.msra.mxu0 %v599
    %906 = vmatpush.bf16.msra.mxu0 %v595
    %907 = vmatpush.bf16.msra.mxu0 %v591
    %908 = vmatmul.bf16.gmra.mxu0 %v857
    %v909 = vpop.f32.mrf.mxu0
    %v910 = vadd.f32 0.0, %v909
    %v911 = vpop.f32.mrf.mxu0
    %v912 = vadd.f32 0.0, %v911
    %913 = vdwg.mxu0
    %v914 = vadd.f32 %v849, %v868
    %v915 = vadd.f32 %v850, %v882
    %v916 = vadd.f32 %v851, %v896
    %v917 = vadd.f32 %v852, %v910
    %v918 = vadd.f32 %v853, %v870
    %v919 = vadd.f32 %v854, %v884
    %v920 = vadd.f32 %v855, %v898
    %v921 = vadd.f32 %v856, %v912
    %v922 = vxor.u32 %v914, 2147483648
    %v923 = vxor.u32 %v915, 2147483648
    %v924 = vxor.u32 %v916, 2147483648
    %v925 = vxor.u32 %v918, 2147483648
    %v926 = vxor.u32 %v919, 2147483648
    %v927 = vxor.u32 %v920, 2147483648
    %v928 = vmul.f32 %v922, 1.442695
    %v929 = vpow.pop %v928
    %v930 = vmul.f32 %v923, 1.442695
    %v931 = vpow.pop %v930
    %v932 = vmul.f32 %v924, 1.442695
    %v933 = vpow.pop %v932
    %v934 = vmul.f32 %v925, 1.442695
    %v935 = vpow.pop %v934
    %v936 = vmul.f32 %v926, 1.442695
    %v937 = vpow.pop %v936
    %v938 = vmul.f32 %v927, 1.442695
    %v939 = vpow.pop %v938
    %v940 = vadd.f32 %v929, 1.0
    %v941 = vadd.f32 %v931, 1.0
    %v942 = vadd.f32 %v933, 1.0
    %v943 = vadd.f32 %v935, 1.0
    %v944 = vadd.f32 %v937, 1.0
    %v945 = vadd.f32 %v939, 1.0
    %v946 = vrcp.pop %v940
    %v947 = vmul.f32 %v940, %v946
    %v948 = vsub.f32 1.0, %v947
    %v949 = vmul.f32 %v946, %v948
    %v950 = vadd.f32 %v946, %v949
    %vm951 = vweird.f32 %v940
    %vm952 = vweird.f32 %v946
    %vm953 = vmor %vm951, %vm952
    %v954 = vsel %vm953, %v946, %v950
    %v955 = vand.u32 2147483647, %v940
    %vm956 = vcmp.eq.f32.partialorder %v955, 8.507059e+37
    %v957 = vand.u32 %v940, 2147483648
    %v958 = vor.u32 1.1754944e-38, %v957
    %v959 = vsel %vm956, %v958, %v954
    %v960 = vmul.f32 1.0, %v959
    %v961 = vrcp.pop %v941
    %v962 = vmul.f32 %v941, %v961
    %v963 = vsub.f32 1.0, %v962
    %v964 = vmul.f32 %v961, %v963
    %v965 = vadd.f32 %v961, %v964
    %vm966 = vweird.f32 %v941
    %vm967 = vweird.f32 %v961
    %vm968 = vmor %vm966, %vm967
    %v969 = vsel %vm968, %v961, %v965
    %v970 = vand.u32 2147483647, %v941
    %vm971 = vcmp.eq.f32.partialorder %v970, 8.507059e+37
    %v972 = vand.u32 %v941, 2147483648
    %v973 = vor.u32 1.1754944e-38, %v972
    %v974 = vsel %vm971, %v973, %v969
    %v975 = vmul.f32 1.0, %v974
    %v976 = vrcp.pop %v942
    %v977 = vmul.f32 %v942, %v976
    %v978 = vsub.f32 1.0, %v977
    %v979 = vmul.f32 %v976, %v978
    %v980 = vadd.f32 %v976, %v979
    %vm981 = vweird.f32 %v942
    %vm982 = vweird.f32 %v976
    %vm983 = vmor %vm981, %vm982
    %v984 = vsel %vm983, %v976, %v980
    %v985 = vand.u32 2147483647, %v942
    %vm986 = vcmp.eq.f32.partialorder %v985, 8.507059e+37
    %v987 = vand.u32 %v942, 2147483648
    %v988 = vor.u32 1.1754944e-38, %v987
    %v989 = vsel %vm986, %v988, %v984
    %v990 = vmul.f32 1.0, %v989
    %v991 = vrcp.pop %v943
    %v992 = vmul.f32 %v943, %v991
    %v993 = vsub.f32 1.0, %v992
    %v994 = vmul.f32 %v991, %v993
    %v995 = vadd.f32 %v991, %v994
    %vm996 = vweird.f32 %v943
    %vm997 = vweird.f32 %v991
    %vm998 = vmor %vm996, %vm997
    %v999 = vsel %vm998, %v991, %v995
    %v1000 = vand.u32 2147483647, %v943
    %vm1001 = vcmp.eq.f32.partialorder %v1000, 8.507059e+37
    %v1002 = vand.u32 %v943, 2147483648
    %v1003 = vor.u32 1.1754944e-38, %v1002
    %v1004 = vsel %vm1001, %v1003, %v999
    %v1005 = vmul.f32 1.0, %v1004
    %v1006 = vrcp.pop %v944
    %v1007 = vmul.f32 %v944, %v1006
    %v1008 = vsub.f32 1.0, %v1007
    %v1009 = vmul.f32 %v1006, %v1008
    %v1010 = vadd.f32 %v1006, %v1009
    %vm1011 = vweird.f32 %v944
    %vm1012 = vweird.f32 %v1006
    %vm1013 = vmor %vm1011, %vm1012
    %v1014 = vsel %vm1013, %v1006, %v1010
    %v1015 = vand.u32 2147483647, %v944
    %vm1016 = vcmp.eq.f32.partialorder %v1015, 8.507059e+37
    %v1017 = vand.u32 %v944, 2147483648
    %v1018 = vor.u32 1.1754944e-38, %v1017
    %v1019 = vsel %vm1016, %v1018, %v1014
    %v1020 = vmul.f32 1.0, %v1019
    %v1021 = vrcp.pop %v945
    %v1022 = vmul.f32 %v945, %v1021
    %v1023 = vsub.f32 1.0, %v1022
    %v1024 = vmul.f32 %v1021, %v1023
    %v1025 = vadd.f32 %v1021, %v1024
    %vm1026 = vweird.f32 %v945
    %vm1027 = vweird.f32 %v1021
    %vm1028 = vmor %vm1026, %vm1027
    %v1029 = vsel %vm1028, %v1021, %v1025
    %v1030 = vand.u32 2147483647, %v945
    %vm1031 = vcmp.eq.f32.partialorder %v1030, 8.507059e+37
    %v1032 = vand.u32 %v945, 2147483648
    %v1033 = vor.u32 1.1754944e-38, %v1032
    %v1034 = vsel %vm1031, %v1033, %v1029
    %v1035 = vmul.f32 1.0, %v1034
    %v1036 = vtanh.pop %v917
    %v1037 = vtanh.pop %v921
    %v1038 = vmul.f32 %v975, %v836
    %v1039 = vmul.f32 %v1020, %v837
    %v1040 = vmul.f32 %v960, %v1036
    %v1041 = vmul.f32 %v1005, %v1037
    %v1042 = vadd.f32 %v1038, %v1040
    %v1043 = vadd.f32 %v1039, %v1041
    %v1044 = vtanh.pop %v1042
    %v1045 = vtanh.pop %v1043
    %v1046 = vmul.f32 %v990, %v1044
    %v1047 = vmul.f32 %v1035, %v1045
    %s1048 = smul.u32 4, 4
    %s1049 = smul.addr %s1048, 4
    %s1050 = scalar_lea.vmem [#allocation4], %s1049
    %v1051 = vld [vmem:[%s1050] sm:$0xff]
    %v1052 = vld [vmem:[%s1050 + $0x8] sm:$0xff]
    %v1053 = vld [vmem:[%s1050 + $0x10] sm:$0xff]
    %v1054 = vld [vmem:[%s1050 + $0x18] sm:$0xff]
    %v1055 = vunpack.c.l.bf16 %v1051
    %v1056 = vunpack.c.h.bf16 %v1051
    %v1057 = vunpack.c.l.bf16 %v1052
    %v1058 = vunpack.c.h.bf16 %v1052
    %v1059 = vunpack.c.l.bf16 %v1053
    %v1060 = vunpack.c.h.bf16 %v1053
    %v1061 = vunpack.c.l.bf16 %v1054
    %v1062 = vunpack.c.h.bf16 %v1054
    %v1063 = vpack.c.bf16 %v1047, %v1046
    %1064 = vmatpush.bf16.msra.mxu0 %v616
    %1065 = vmatpush.bf16.msra.mxu0 %v612
    %1066 = vmatpush.bf16.msra.mxu0 %v608
    %1067 = vmatpush.bf16.msra.mxu0 %v604
    %1068 = vmatpush.bf16.msra.mxu0 %v600
    %1069 = vmatpush.bf16.msra.mxu0 %v596
    %1070 = vmatpush.bf16.msra.mxu0 %v592
    %1071 = vmatpush.bf16.msra.mxu0 %v588
    %1072 = vmatmul.bf16.gmra.mxu0 %v1063
    %v1073 = vpop.f32.mrf.mxu0
    %v1074 = vadd.f32 0.0, %v1073
    %v1075 = vpop.f32.mrf.mxu0
    %v1076 = vadd.f32 0.0, %v1075
    %1077 = vdwg.mxu0
    %1078 = vmatpush.bf16.msra.mxu0 %v617
    %1079 = vmatpush.bf16.msra.mxu0 %v613
    %1080 = vmatpush.bf16.msra.mxu0 %v609
    %1081 = vmatpush.bf16.msra.mxu0 %v605
    %1082 = vmatpush.bf16.msra.mxu0 %v601
    %1083 = vmatpush.bf16.msra.mxu0 %v597
    %1084 = vmatpush.bf16.msra.mxu0 %v593
    %1085 = vmatpush.bf16.msra.mxu0 %v589
    %1086 = vmatmul.bf16.gmra.mxu0 %v1063
    %v1087 = vpop.f32.mrf.mxu0
    %v1088 = vadd.f32 0.0, %v1087
    %v1089 = vpop.f32.mrf.mxu0
    %v1090 = vadd.f32 0.0, %v1089
    %1091 = vdwg.mxu0
    %1092 = vmatpush.bf16.msra.mxu0 %v618
    %1093 = vmatpush.bf16.msra.mxu0 %v614
    %1094 = vmatpush.bf16.msra.mxu0 %v610
    %1095 = vmatpush.bf16.msra.mxu0 %v606
    %1096 = vmatpush.bf16.msra.mxu0 %v602
    %1097 = vmatpush.bf16.msra.mxu0 %v598
    %1098 = vmatpush.bf16.msra.mxu0 %v594
    %1099 = vmatpush.bf16.msra.mxu0 %v590
    %1100 = vmatmul.bf16.gmra.mxu0 %v1063
    %v1101 = vpop.f32.mrf.mxu0
    %v1102 = vadd.f32 0.0, %v1101
    %v1103 = vpop.f32.mrf.mxu0
    %v1104 = vadd.f32 0.0, %v1103
    %1105 = vdwg.mxu0
    %1106 = vmatpush.bf16.msra.mxu0 %v619
    %1107 = vmatpush.bf16.msra.mxu0 %v615
    %1108 = vmatpush.bf16.msra.mxu0 %v611
    %1109 = vmatpush.bf16.msra.mxu0 %v607
    %1110 = vmatpush.bf16.msra.mxu0 %v603
    %1111 = vmatpush.bf16.msra.mxu0 %v599
    %1112 = vmatpush.bf16.msra.mxu0 %v595
    %1113 = vmatpush.bf16.msra.mxu0 %v591
    %1114 = vmatmul.bf16.gmra.mxu0 %v1063
    %v1115 = vpop.f32.mrf.mxu0
    %v1116 = vadd.f32 0.0, %v1115
    %v1117 = vpop.f32.mrf.mxu0
    %v1118 = vadd.f32 0.0, %v1117
    %1119 = vdwg.mxu0
    %v1120 = vadd.f32 %v1055, %v1074
    %v1121 = vadd.f32 %v1056, %v1088
    %v1122 = vadd.f32 %v1057, %v1102
    %v1123 = vadd.f32 %v1058, %v1116
    %v1124 = vadd.f32 %v1059, %v1076
    %v1125 = vadd.f32 %v1060, %v1090
    %v1126 = vadd.f32 %v1061, %v1104
    %v1127 = vadd.f32 %v1062, %v1118
    %v1128 = vxor.u32 %v1120, 2147483648
    %v1129 = vxor.u32 %v1121, 2147483648
    %v1130 = vxor.u32 %v1122, 2147483648
    %v1131 = vxor.u32 %v1124, 2147483648
    %v1132 = vxor.u32 %v1125, 2147483648
    %v1133 = vxor.u32 %v1126, 2147483648
    %v1134 = vmul.f32 %v1128, 1.442695
    %v1135 = vpow.pop %v1134
    %v1136 = vmul.f32 %v1129, 1.442695
    %v1137 = vpow.pop %v1136
    %v1138 = vmul.f32 %v1130, 1.442695
    %v1139 = vpow.pop %v1138
    %v1140 = vmul.f32 %v1131, 1.442695
    %v1141 = vpow.pop %v1140
    %v1142 = vmul.f32 %v1132, 1.442695
    %v1143 = vpow.pop %v1142
    %v1144 = vmul.f32 %v1133, 1.442695
    %v1145 = vpow.pop %v1144
    %v1146 = vadd.f32 %v1135, 1.0
    %v1147 = vadd.f32 %v1137, 1.0
    %v1148 = vadd.f32 %v1139, 1.0
    %v1149 = vadd.f32 %v1141, 1.0
    %v1150 = vadd.f32 %v1143, 1.0
    %v1151 = vadd.f32 %v1145, 1.0
    %v1152 = vrcp.pop %v1146
    %v1153 = vmul.f32 %v1146, %v1152
    %v1154 = vsub.f32 1.0, %v1153
    %v1155 = vmul.f32 %v1152, %v1154
    %v1156 = vadd.f32 %v1152, %v1155
    %vm1157 = vweird.f32 %v1146
    %vm1158 = vweird.f32 %v1152
    %vm1159 = vmor %vm1157, %vm1158
    %v1160 = vsel %vm1159, %v1152, %v1156
    %v1161 = vand.u32 2147483647, %v1146
    %vm1162 = vcmp.eq.f32.partialorder %v1161, 8.507059e+37
    %v1163 = vand.u32 %v1146, 2147483648
    %v1164 = vor.u32 1.1754944e-38, %v1163
    %v1165 = vsel %vm1162, %v1164, %v1160
    %v1166 = vmul.f32 1.0, %v1165
    %v1167 = vrcp.pop %v1147
    %v1168 = vmul.f32 %v1147, %v1167
    %v1169 = vsub.f32 1.0, %v1168
    %v1170 = vmul.f32 %v1167, %v1169
    %v1171 = vadd.f32 %v1167, %v1170
    %vm1172 = vweird.f32 %v1147
    %vm1173 = vweird.f32 %v1167
    %vm1174 = vmor %vm1172, %vm1173
    %v1175 = vsel %vm1174, %v1167, %v1171
    %v1176 = vand.u32 2147483647, %v1147
    %vm1177 = vcmp.eq.f32.partialorder %v1176, 8.507059e+37
    %v1178 = vand.u32 %v1147, 2147483648
    %v1179 = vor.u32 1.1754944e-38, %v1178
    %v1180 = vsel %vm1177, %v1179, %v1175
    %v1181 = vmul.f32 1.0, %v1180
    %v1182 = vrcp.pop %v1148
    %v1183 = vmul.f32 %v1148, %v1182
    %v1184 = vsub.f32 1.0, %v1183
    %v1185 = vmul.f32 %v1182, %v1184
    %v1186 = vadd.f32 %v1182, %v1185
    %vm1187 = vweird.f32 %v1148
    %vm1188 = vweird.f32 %v1182
    %vm1189 = vmor %vm1187, %vm1188
    %v1190 = vsel %vm1189, %v1182, %v1186
    %v1191 = vand.u32 2147483647, %v1148
    %vm1192 = vcmp.eq.f32.partialorder %v1191, 8.507059e+37
    %v1193 = vand.u32 %v1148, 2147483648
    %v1194 = vor.u32 1.1754944e-38, %v1193
    %v1195 = vsel %vm1192, %v1194, %v1190
    %v1196 = vmul.f32 1.0, %v1195
    %v1197 = vrcp.pop %v1149
    %v1198 = vmul.f32 %v1149, %v1197
    %v1199 = vsub.f32 1.0, %v1198
    %v1200 = vmul.f32 %v1197, %v1199
    %v1201 = vadd.f32 %v1197, %v1200
    %vm1202 = vweird.f32 %v1149
    %vm1203 = vweird.f32 %v1197
    %vm1204 = vmor %vm1202, %vm1203
    %v1205 = vsel %vm1204, %v1197, %v1201
    %v1206 = vand.u32 2147483647, %v1149
    %vm1207 = vcmp.eq.f32.partialorder %v1206, 8.507059e+37
    %v1208 = vand.u32 %v1149, 2147483648
    %v1209 = vor.u32 1.1754944e-38, %v1208
    %v1210 = vsel %vm1207, %v1209, %v1205
    %v1211 = vmul.f32 1.0, %v1210
    %v1212 = vrcp.pop %v1150
    %v1213 = vmul.f32 %v1150, %v1212
    %v1214 = vsub.f32 1.0, %v1213
    %v1215 = vmul.f32 %v1212, %v1214
    %v1216 = vadd.f32 %v1212, %v1215
    %vm1217 = vweird.f32 %v1150
    %vm1218 = vweird.f32 %v1212
    %vm1219 = vmor %vm1217, %vm1218
    %v1220 = vsel %vm1219, %v1212, %v1216
    %v1221 = vand.u32 2147483647, %v1150
    %vm1222 = vcmp.eq.f32.partialorder %v1221, 8.507059e+37
    %v1223 = vand.u32 %v1150, 2147483648
    %v1224 = vor.u32 1.1754944e-38, %v1223
    %v1225 = vsel %vm1222, %v1224, %v1220
    %v1226 = vmul.f32 1.0, %v1225
    %v1227 = vrcp.pop %v1151
    %v1228 = vmul.f32 %v1151, %v1227
    %v1229 = vsub.f32 1.0, %v1228
    %v1230 = vmul.f32 %v1227, %v1229
    %v1231 = vadd.f32 %v1227, %v1230
    %vm1232 = vweird.f32 %v1151
    %vm1233 = vweird.f32 %v1227
    %vm1234 = vmor %vm1232, %vm1233
    %v1235 = vsel %vm1234, %v1227, %v1231
    %v1236 = vand.u32 2147483647, %v1151
    %vm1237 = vcmp.eq.f32.partialorder %v1236, 8.507059e+37
    %v1238 = vand.u32 %v1151, 2147483648
    %v1239 = vor.u32 1.1754944e-38, %v1238
    %v1240 = vsel %vm1237, %v1239, %v1235
    %v1241 = vmul.f32 1.0, %v1240
    %v1242 = vtanh.pop %v1123
    %v1243 = vtanh.pop %v1127
    %v1244 = vmul.f32 %v1181, %v1042
    %v1245 = vmul.f32 %v1226, %v1043
    %v1246 = vmul.f32 %v1166, %v1242
    %v1247 = vmul.f32 %v1211, %v1243
    %v1248 = vadd.f32 %v1244, %v1246
    %v1249 = vadd.f32 %v1245, %v1247
    %v1250 = vtanh.pop %v1248
    %v1251 = vtanh.pop %v1249
    %v1252 = vmul.f32 %v1196, %v1250
    %v1253 = vmul.f32 %v1241, %v1251
    %s1254 = smul.u32 6, 4
    %s1255 = smul.addr %s1254, 4
    %s1256 = scalar_lea.vmem [#allocation4], %s1255
    %v1257 = vld [vmem:[%s1256] sm:$0xff]
    %v1258 = vld [vmem:[%s1256 + $0x8] sm:$0xff]
    %v1259 = vld [vmem:[%s1256 + $0x10] sm:$0xff]
    %v1260 = vld [vmem:[%s1256 + $0x18] sm:$0xff]
    %v1261 = vunpack.c.l.bf16 %v1257
    %v1262 = vunpack.c.h.bf16 %v1257
    %v1263 = vunpack.c.l.bf16 %v1258
    %v1264 = vunpack.c.h.bf16 %v1258
    %v1265 = vunpack.c.l.bf16 %v1259
    %v1266 = vunpack.c.h.bf16 %v1259
    %v1267 = vunpack.c.l.bf16 %v1260
    %v1268 = vunpack.c.h.bf16 %v1260
    %v1269 = vpack.c.bf16 %v1253, %v1252
    %1270 = vmatpush.bf16.msra.mxu0 %v616
    %1271 = vmatpush.bf16.msra.mxu0 %v612
    %1272 = vmatpush.bf16.msra.mxu0 %v608
    %1273 = vmatpush.bf16.msra.mxu0 %v604
    %1274 = vmatpush.bf16.msra.mxu0 %v600
    %1275 = vmatpush.bf16.msra.mxu0 %v596
    %1276 = vmatpush.bf16.msra.mxu0 %v592
    %1277 = vmatpush.bf16.msra.mxu0 %v588
    %1278 = vmatmul.bf16.gmra.mxu0 %v1269
    %v1279 = vpop.f32.mrf.mxu0
    %v1280 = vadd.f32 0.0, %v1279
    %v1281 = vpop.f32.mrf.mxu0
    %v1282 = vadd.f32 0.0, %v1281
    %1283 = vdwg.mxu0
    %1284 = vmatpush.bf16.msra.mxu0 %v617
    %1285 = vmatpush.bf16.msra.mxu0 %v613
    %1286 = vmatpush.bf16.msra.mxu0 %v609
    %1287 = vmatpush.bf16.msra.mxu0 %v605
    %1288 = vmatpush.bf16.msra.mxu0 %v601
    %1289 = vmatpush.bf16.msra.mxu0 %v597
    %1290 = vmatpush.bf16.msra.mxu0 %v593
    %1291 = vmatpush.bf16.msra.mxu0 %v589
    %1292 = vmatmul.bf16.gmra.mxu0 %v1269
    %v1293 = vpop.f32.mrf.mxu0
    %v1294 = vadd.f32 0.0, %v1293
    %v1295 = vpop.f32.mrf.mxu0
    %v1296 = vadd.f32 0.0, %v1295
    %1297 = vdwg.mxu0
    %1298 = vmatpush.bf16.msra.mxu0 %v618
    %1299 = vmatpush.bf16.msra.mxu0 %v614
    %1300 = vmatpush.bf16.msra.mxu0 %v610
    %1301 = vmatpush.bf16.msra.mxu0 %v606
    %1302 = vmatpush.bf16.msra.mxu0 %v602
    %1303 = vmatpush.bf16.msra.mxu0 %v598
    %1304 = vmatpush.bf16.msra.mxu0 %v594
    %1305 = vmatpush.bf16.msra.mxu0 %v590
    %1306 = vmatmul.bf16.gmra.mxu0 %v1269
    %v1307 = vpop.f32.mrf.mxu0
    %v1308 = vadd.f32 0.0, %v1307
    %v1309 = vpop.f32.mrf.mxu0
    %v1310 = vadd.f32 0.0, %v1309
    %1311 = vdwg.mxu0
    %1312 = vmatpush.bf16.msra.mxu0 %v619
    %1313 = vmatpush.bf16.msra.mxu0 %v615
    %1314 = vmatpush.bf16.msra.mxu0 %v611
    %1315 = vmatpush.bf16.msra.mxu0 %v607
    %1316 = vmatpush.bf16.msra.mxu0 %v603
    %1317 = vmatpush.bf16.msra.mxu0 %v599
    %1318 = vmatpush.bf16.msra.mxu0 %v595
    %1319 = vmatpush.bf16.msra.mxu0 %v591
    %1320 = vmatmul.bf16.gmra.mxu0 %v1269
    %v1321 = vpop.f32.mrf.mxu0
    %v1322 = vadd.f32 0.0, %v1321
    %v1323 = vpop.f32.mrf.mxu0
    %v1324 = vadd.f32 0.0, %v1323
    %1325 = vdwg.mxu0
    %v1326 = vadd.f32 %v1261, %v1280
    %v1327 = vadd.f32 %v1262, %v1294
    %v1328 = vadd.f32 %v1263, %v1308
    %v1329 = vadd.f32 %v1264, %v1322
    %v1330 = vadd.f32 %v1265, %v1282
    %v1331 = vadd.f32 %v1266, %v1296
    %v1332 = vadd.f32 %v1267, %v1310
    %v1333 = vadd.f32 %v1268, %v1324
    %v1334 = vxor.u32 %v1326, 2147483648
    %v1335 = vxor.u32 %v1327, 2147483648
    %v1336 = vxor.u32 %v1328, 2147483648
    %v1337 = vxor.u32 %v1330, 2147483648
    %v1338 = vxor.u32 %v1331, 2147483648
    %v1339 = vxor.u32 %v1332, 2147483648
    %v1340 = vmul.f32 %v1334, 1.442695
    %v1341 = vpow.pop %v1340
    %v1342 = vmul.f32 %v1335, 1.442695
    %v1343 = vpow.pop %v1342
    %v1344 = vmul.f32 %v1336, 1.442695
    %v1345 = vpow.pop %v1344
    %v1346 = vmul.f32 %v1337, 1.442695
    %v1347 = vpow.pop %v1346
    %v1348 = vmul.f32 %v1338, 1.442695
    %v1349 = vpow.pop %v1348
    %v1350 = vmul.f32 %v1339, 1.442695
    %v1351 = vpow.pop %v1350
    %v1352 = vadd.f32 %v1341, 1.0
    %v1353 = vadd.f32 %v1343, 1.0
    %v1354 = vadd.f32 %v1345, 1.0
    %v1355 = vadd.f32 %v1347, 1.0
    %v1356 = vadd.f32 %v1349, 1.0
    %v1357 = vadd.f32 %v1351, 1.0
    %v1358 = vrcp.pop %v1352
    %v1359 = vmul.f32 %v1352, %v1358
    %v1360 = vsub.f32 1.0, %v1359
    %v1361 = vmul.f32 %v1358, %v1360
    %v1362 = vadd.f32 %v1358, %v1361
    %vm1363 = vweird.f32 %v1352
    %vm1364 = vweird.f32 %v1358
    %vm1365 = vmor %vm1363, %vm1364
    %v1366 = vsel %vm1365, %v1358, %v1362
    %v1367 = vand.u32 2147483647, %v1352
    %vm1368 = vcmp.eq.f32.partialorder %v1367, 8.507059e+37
    %v1369 = vand.u32 %v1352, 2147483648
    %v1370 = vor.u32 1.1754944e-38, %v1369
    %v1371 = vsel %vm1368, %v1370, %v1366
    %v1372 = vmul.f32 1.0, %v1371
    %v1373 = vrcp.pop %v1353
    %v1374 = vmul.f32 %v1353, %v1373
    %v1375 = vsub.f32 1.0, %v1374
    %v1376 = vmul.f32 %v1373, %v1375
    %v1377 = vadd.f32 %v1373, %v1376
    %vm1378 = vweird.f32 %v1353
    %vm1379 = vweird.f32 %v1373
    %vm1380 = vmor %vm1378, %vm1379
    %v1381 = vsel %vm1380, %v1373, %v1377
    %v1382 = vand.u32 2147483647, %v1353
    %vm1383 = vcmp.eq.f32.partialorder %v1382, 8.507059e+37
    %v1384 = vand.u32 %v1353, 2147483648
    %v1385 = vor.u32 1.1754944e-38, %v1384
    %v1386 = vsel %vm1383, %v1385, %v1381
    %v1387 = vmul.f32 1.0, %v1386
    %v1388 = vrcp.pop %v1354
    %v1389 = vmul.f32 %v1354, %v1388
    %v1390 = vsub.f32 1.0, %v1389
    %v1391 = vmul.f32 %v1388, %v1390
    %v1392 = vadd.f32 %v1388, %v1391
    %vm1393 = vweird.f32 %v1354
    %vm1394 = vweird.f32 %v1388
    %vm1395 = vmor %vm1393, %vm1394
    %v1396 = vsel %vm1395, %v1388, %v1392
    %v1397 = vand.u32 2147483647, %v1354
    %vm1398 = vcmp.eq.f32.partialorder %v1397, 8.507059e+37
    %v1399 = vand.u32 %v1354, 2147483648
    %v1400 = vor.u32 1.1754944e-38, %v1399
    %v1401 = vsel %vm1398, %v1400, %v1396
    %v1402 = vmul.f32 1.0, %v1401
    %v1403 = vrcp.pop %v1355
    %v1404 = vmul.f32 %v1355, %v1403
    %v1405 = vsub.f32 1.0, %v1404
    %v1406 = vmul.f32 %v1403, %v1405
    %v1407 = vadd.f32 %v1403, %v1406
    %vm1408 = vweird.f32 %v1355
    %vm1409 = vweird.f32 %v1403
    %vm1410 = vmor %vm1408, %vm1409
    %v1411 = vsel %vm1410, %v1403, %v1407
    %v1412 = vand.u32 2147483647, %v1355
    %vm1413 = vcmp.eq.f32.partialorder %v1412, 8.507059e+37
    %v1414 = vand.u32 %v1355, 2147483648
    %v1415 = vor.u32 1.1754944e-38, %v1414
    %v1416 = vsel %vm1413, %v1415, %v1411
    %v1417 = vmul.f32 1.0, %v1416
    %v1418 = vrcp.pop %v1356
    %v1419 = vmul.f32 %v1356, %v1418
    %v1420 = vsub.f32 1.0, %v1419
    %v1421 = vmul.f32 %v1418, %v1420
    %v1422 = vadd.f32 %v1418, %v1421
    %vm1423 = vweird.f32 %v1356
    %vm1424 = vweird.f32 %v1418
    %vm1425 = vmor %vm1423, %vm1424
    %v1426 = vsel %vm1425, %v1418, %v1422
    %v1427 = vand.u32 2147483647, %v1356
    %vm1428 = vcmp.eq.f32.partialorder %v1427, 8.507059e+37
    %v1429 = vand.u32 %v1356, 2147483648
    %v1430 = vor.u32 1.1754944e-38, %v1429
    %v1431 = vsel %vm1428, %v1430, %v1426
    %v1432 = vmul.f32 1.0, %v1431
    %v1433 = vrcp.pop %v1357
    %v1434 = vmul.f32 %v1357, %v1433
    %v1435 = vsub.f32 1.0, %v1434
    %v1436 = vmul.f32 %v1433, %v1435
    %v1437 = vadd.f32 %v1433, %v1436
    %vm1438 = vweird.f32 %v1357
    %vm1439 = vweird.f32 %v1433
    %vm1440 = vmor %vm1438, %vm1439
    %v1441 = vsel %vm1440, %v1433, %v1437
    %v1442 = vand.u32 2147483647, %v1357
    %vm1443 = vcmp.eq.f32.partialorder %v1442, 8.507059e+37
    %v1444 = vand.u32 %v1357, 2147483648
    %v1445 = vor.u32 1.1754944e-38, %v1444
    %v1446 = vsel %vm1443, %v1445, %v1441
    %v1447 = vmul.f32 1.0, %v1446
    %v1448 = vtanh.pop %v1329
    %v1449 = vtanh.pop %v1333
    %v1450 = vmul.f32 %v1387, %v1248
    %v1451 = vmul.f32 %v1432, %v1249
    %v1452 = vmul.f32 %v1372, %v1448
    %v1453 = vmul.f32 %v1417, %v1449
    %v1454 = vadd.f32 %v1450, %v1452
    %v1455 = vadd.f32 %v1451, %v1453
    %v1456 = vtanh.pop %v1454
    %v1457 = vtanh.pop %v1455
    %v1458 = vmul.f32 %v1402, %v1456
    %v1459 = vmul.f32 %v1447, %v1457
    %s1460 = smul.u32 8, 4
    %s1461 = smul.addr %s1460, 4
    %s1462 = scalar_lea.vmem [#allocation4], %s1461
    %v1463 = vld [vmem:[%s1462] sm:$0xff]
    %v1464 = vld [vmem:[%s1462 + $0x8] sm:$0xff]
    %v1465 = vld [vmem:[%s1462 + $0x10] sm:$0xff]
    %v1466 = vld [vmem:[%s1462 + $0x18] sm:$0xff]
    %v1467 = vunpack.c.l.bf16 %v1463
    %v1468 = vunpack.c.h.bf16 %v1463
    %v1469 = vunpack.c.l.bf16 %v1464
    %v1470 = vunpack.c.h.bf16 %v1464
    %v1471 = vunpack.c.l.bf16 %v1465
    %v1472 = vunpack.c.h.bf16 %v1465
    %v1473 = vunpack.c.l.bf16 %v1466
    %v1474 = vunpack.c.h.bf16 %v1466
    %v1475 = vpack.c.bf16 %v1459, %v1458
    %1476 = vmatpush.bf16.msra.mxu0 %v616
    %1477 = vmatpush.bf16.msra.mxu0 %v612
    %1478 = vmatpush.bf16.msra.mxu0 %v608
    %1479 = vmatpush.bf16.msra.mxu0 %v604
    %1480 = vmatpush.bf16.msra.mxu0 %v600
    %1481 = vmatpush.bf16.msra.mxu0 %v596
    %1482 = vmatpush.bf16.msra.mxu0 %v592
    %1483 = vmatpush.bf16.msra.mxu0 %v588
    %1484 = vmatmul.bf16.gmra.mxu0 %v1475
    %v1485 = vpop.f32.mrf.mxu0
    %v1486 = vadd.f32 0.0, %v1485
    %v1487 = vpop.f32.mrf.mxu0
    %v1488 = vadd.f32 0.0, %v1487
    %1489 = vdwg.mxu0
    %1490 = vmatpush.bf16.msra.mxu0 %v617
    %1491 = vmatpush.bf16.msra.mxu0 %v613
    %1492 = vmatpush.bf16.msra.mxu0 %v609
    %1493 = vmatpush.bf16.msra.mxu0 %v605
    %1494 = vmatpush.bf16.msra.mxu0 %v601
    %1495 = vmatpush.bf16.msra.mxu0 %v597
    %1496 = vmatpush.bf16.msra.mxu0 %v593
    %1497 = vmatpush.bf16.msra.mxu0 %v589
    %1498 = vmatmul.bf16.gmra.mxu0 %v1475
    %v1499 = vpop.f32.mrf.mxu0
    %v1500 = vadd.f32 0.0, %v1499
    %v1501 = vpop.f32.mrf.mxu0
    %v1502 = vadd.f32 0.0, %v1501
    %1503 = vdwg.mxu0
    %1504 = vmatpush.bf16.msra.mxu0 %v618
    %1505 = vmatpush.bf16.msra.mxu0 %v614
    %1506 = vmatpush.bf16.msra.mxu0 %v610
    %1507 = vmatpush.bf16.msra.mxu0 %v606
    %1508 = vmatpush.bf16.msra.mxu0 %v602
    %1509 = vmatpush.bf16.msra.mxu0 %v598
    %1510 = vmatpush.bf16.msra.mxu0 %v594
    %1511 = vmatpush.bf16.msra.mxu0 %v590
    %1512 = vmatmul.bf16.gmra.mxu0 %v1475
    %v1513 = vpop.f32.mrf.mxu0
    %v1514 = vadd.f32 0.0, %v1513
    %v1515 = vpop.f32.mrf.mxu0
    %v1516 = vadd.f32 0.0, %v1515
    %1517 = vdwg.mxu0
    %1518 = vmatpush.bf16.msra.mxu0 %v619
    %1519 = vmatpush.bf16.msra.mxu0 %v615
    %1520 = vmatpush.bf16.msra.mxu0 %v611
    %1521 = vmatpush.bf16.msra.mxu0 %v607
    %1522 = vmatpush.bf16.msra.mxu0 %v603
    %1523 = vmatpush.bf16.msra.mxu0 %v599
    %1524 = vmatpush.bf16.msra.mxu0 %v595
    %1525 = vmatpush.bf16.msra.mxu0 %v591
    %1526 = vmatmul.bf16.gmra.mxu0 %v1475
    %v1527 = vpop.f32.mrf.mxu0
    %v1528 = vadd.f32 0.0, %v1527
    %v1529 = vpop.f32.mrf.mxu0
    %v1530 = vadd.f32 0.0, %v1529
    %1531 = vdwg.mxu0
    %v1532 = vadd.f32 %v1467, %v1486
    %v1533 = vadd.f32 %v1468, %v1500
    %v1534 = vadd.f32 %v1469, %v1514
    %v1535 = vadd.f32 %v1470, %v1528
    %v1536 = vadd.f32 %v1471, %v1488
    %v1537 = vadd.f32 %v1472, %v1502
    %v1538 = vadd.f32 %v1473, %v1516
    %v1539 = vadd.f32 %v1474, %v1530
    %v1540 = vxor.u32 %v1532, 2147483648
    %v1541 = vxor.u32 %v1533, 2147483648
    %v1542 = vxor.u32 %v1534, 2147483648
    %v1543 = vxor.u32 %v1536, 2147483648
    %v1544 = vxor.u32 %v1537, 2147483648
    %v1545 = vxor.u32 %v1538, 2147483648
    %v1546 = vmul.f32 %v1540, 1.442695
    %v1547 = vpow.pop %v1546
    %v1548 = vmul.f32 %v1541, 1.442695
    %v1549 = vpow.pop %v1548
    %v1550 = vmul.f32 %v1542, 1.442695
    %v1551 = vpow.pop %v1550
    %v1552 = vmul.f32 %v1543, 1.442695
    %v1553 = vpow.pop %v1552
    %v1554 = vmul.f32 %v1544, 1.442695
    %v1555 = vpow.pop %v1554
    %v1556 = vmul.f32 %v1545, 1.442695
    %v1557 = vpow.pop %v1556
    %v1558 = vadd.f32 %v1547, 1.0
    %v1559 = vadd.f32 %v1549, 1.0
    %v1560 = vadd.f32 %v1551, 1.0
    %v1561 = vadd.f32 %v1553, 1.0
    %v1562 = vadd.f32 %v1555, 1.0
    %v1563 = vadd.f32 %v1557, 1.0
    %v1564 = vrcp.pop %v1558
    %v1565 = vmul.f32 %v1558, %v1564
    %v1566 = vsub.f32 1.0, %v1565
    %v1567 = vmul.f32 %v1564, %v1566
    %v1568 = vadd.f32 %v1564, %v1567
    %vm1569 = vweird.f32 %v1558
    %vm1570 = vweird.f32 %v1564
    %vm1571 = vmor %vm1569, %vm1570
    %v1572 = vsel %vm1571, %v1564, %v1568
    %v1573 = vand.u32 2147483647, %v1558
    %vm1574 = vcmp.eq.f32.partialorder %v1573, 8.507059e+37
    %v1575 = vand.u32 %v1558, 2147483648
    %v1576 = vor.u32 1.1754944e-38, %v1575
    %v1577 = vsel %vm1574, %v1576, %v1572
    %v1578 = vmul.f32 1.0, %v1577
    %v1579 = vrcp.pop %v1559
    %v1580 = vmul.f32 %v1559, %v1579
    %v1581 = vsub.f32 1.0, %v1580
    %v1582 = vmul.f32 %v1579, %v1581
    %v1583 = vadd.f32 %v1579, %v1582
    %vm1584 = vweird.f32 %v1559
    %vm1585 = vweird.f32 %v1579
    %vm1586 = vmor %vm1584, %vm1585
    %v1587 = vsel %vm1586, %v1579, %v1583
    %v1588 = vand.u32 2147483647, %v1559
    %vm1589 = vcmp.eq.f32.partialorder %v1588, 8.507059e+37
    %v1590 = vand.u32 %v1559, 2147483648
    %v1591 = vor.u32 1.1754944e-38, %v1590
    %v1592 = vsel %vm1589, %v1591, %v1587
    %v1593 = vmul.f32 1.0, %v1592
    %v1594 = vrcp.pop %v1560
    %v1595 = vmul.f32 %v1560, %v1594
    %v1596 = vsub.f32 1.0, %v1595
    %v1597 = vmul.f32 %v1594, %v1596
    %v1598 = vadd.f32 %v1594, %v1597
    %vm1599 = vweird.f32 %v1560
    %vm1600 = vweird.f32 %v1594
    %vm1601 = vmor %vm1599, %vm1600
    %v1602 = vsel %vm1601, %v1594, %v1598
    %v1603 = vand.u32 2147483647, %v1560
    %vm1604 = vcmp.eq.f32.partialorder %v1603, 8.507059e+37
    %v1605 = vand.u32 %v1560, 2147483648
    %v1606 = vor.u32 1.1754944e-38, %v1605
    %v1607 = vsel %vm1604, %v1606, %v1602
    %v1608 = vmul.f32 1.0, %v1607
    %v1609 = vrcp.pop %v1561
    %v1610 = vmul.f32 %v1561, %v1609
    %v1611 = vsub.f32 1.0, %v1610
    %v1612 = vmul.f32 %v1609, %v1611
    %v1613 = vadd.f32 %v1609, %v1612
    %vm1614 = vweird.f32 %v1561
    %vm1615 = vweird.f32 %v1609
    %vm1616 = vmor %vm1614, %vm1615
    %v1617 = vsel %vm1616, %v1609, %v1613
    %v1618 = vand.u32 2147483647, %v1561
    %vm1619 = vcmp.eq.f32.partialorder %v1618, 8.507059e+37
    %v1620 = vand.u32 %v1561, 2147483648
    %v1621 = vor.u32 1.1754944e-38, %v1620
    %v1622 = vsel %vm1619, %v1621, %v1617
    %v1623 = vmul.f32 1.0, %v1622
    %v1624 = vrcp.pop %v1562
    %v1625 = vmul.f32 %v1562, %v1624
    %v1626 = vsub.f32 1.0, %v1625
    %v1627 = vmul.f32 %v1624, %v1626
    %v1628 = vadd.f32 %v1624, %v1627
    %vm1629 = vweird.f32 %v1562
    %vm1630 = vweird.f32 %v1624
    %vm1631 = vmor %vm1629, %vm1630
    %v1632 = vsel %vm1631, %v1624, %v1628
    %v1633 = vand.u32 2147483647, %v1562
    %vm1634 = vcmp.eq.f32.partialorder %v1633, 8.507059e+37
    %v1635 = vand.u32 %v1562, 2147483648
    %v1636 = vor.u32 1.1754944e-38, %v1635
    %v1637 = vsel %vm1634, %v1636, %v1632
    %v1638 = vmul.f32 1.0, %v1637
    %v1639 = vrcp.pop %v1563
    %v1640 = vmul.f32 %v1563, %v1639
    %v1641 = vsub.f32 1.0, %v1640
    %v1642 = vmul.f32 %v1639, %v1641
    %v1643 = vadd.f32 %v1639, %v1642
    %vm1644 = vweird.f32 %v1563
    %vm1645 = vweird.f32 %v1639
    %vm1646 = vmor %vm1644, %vm1645
    %v1647 = vsel %vm1646, %v1639, %v1643
    %v1648 = vand.u32 2147483647, %v1563
    %vm1649 = vcmp.eq.f32.partialorder %v1648, 8.507059e+37
    %v1650 = vand.u32 %v1563, 2147483648
    %v1651 = vor.u32 1.1754944e-38, %v1650
    %v1652 = vsel %vm1649, %v1651, %v1647
    %v1653 = vmul.f32 1.0, %v1652
    %v1654 = vtanh.pop %v1535
    %v1655 = vtanh.pop %v1539
    %v1656 = vmul.f32 %v1593, %v1454
    %v1657 = vmul.f32 %v1638, %v1455
    %v1658 = vmul.f32 %v1578, %v1654
    %v1659 = vmul.f32 %v1623, %v1655
    %v1660 = vadd.f32 %v1656, %v1658
    %v1661 = vadd.f32 %v1657, %v1659
    %v1662 = vtanh.pop %v1660
    %v1663 = vtanh.pop %v1661
    %v1664 = vmul.f32 %v1608, %v1662
    %v1665 = vmul.f32 %v1653, %v1663
    %s1666 = smul.u32 10, 4
    %s1667 = smul.addr %s1666, 4
    %s1668 = scalar_lea.vmem [#allocation4], %s1667
    %v1669 = vld [vmem:[%s1668] sm:$0xff]
    %v1670 = vld [vmem:[%s1668 + $0x8] sm:$0xff]
    %v1671 = vld [vmem:[%s1668 + $0x10] sm:$0xff]
    %v1672 = vld [vmem:[%s1668 + $0x18] sm:$0xff]
    %v1673 = vunpack.c.l.bf16 %v1669
    %v1674 = vunpack.c.h.bf16 %v1669
    %v1675 = vunpack.c.l.bf16 %v1670
    %v1676 = vunpack.c.h.bf16 %v1670
    %v1677 = vunpack.c.l.bf16 %v1671
    %v1678 = vunpack.c.h.bf16 %v1671
    %v1679 = vunpack.c.l.bf16 %v1672
    %v1680 = vunpack.c.h.bf16 %v1672
    %v1681 = vpack.c.bf16 %v1665, %v1664
    %1682 = vmatpush.bf16.msra.mxu0 %v616
    %1683 = vmatpush.bf16.msra.mxu0 %v612
    %1684 = vmatpush.bf16.msra.mxu0 %v608
    %1685 = vmatpush.bf16.msra.mxu0 %v604
    %1686 = vmatpush.bf16.msra.mxu0 %v600
    %1687 = vmatpush.bf16.msra.mxu0 %v596
    %1688 = vmatpush.bf16.msra.mxu0 %v592
    %1689 = vmatpush.bf16.msra.mxu0 %v588
    %1690 = vmatmul.bf16.gmra.mxu0 %v1681
    %v1691 = vpop.f32.mrf.mxu0
    %v1692 = vadd.f32 0.0, %v1691
    %v1693 = vpop.f32.mrf.mxu0
    %v1694 = vadd.f32 0.0, %v1693
    %1695 = vdwg.mxu0
    %1696 = vmatpush.bf16.msra.mxu0 %v617
    %1697 = vmatpush.bf16.msra.mxu0 %v613
    %1698 = vmatpush.bf16.msra.mxu0 %v609
    %1699 = vmatpush.bf16.msra.mxu0 %v605
    %1700 = vmatpush.bf16.msra.mxu0 %v601
    %1701 = vmatpush.bf16.msra.mxu0 %v597
    %1702 = vmatpush.bf16.msra.mxu0 %v593
    %1703 = vmatpush.bf16.msra.mxu0 %v589
    %1704 = vmatmul.bf16.gmra.mxu0 %v1681
    %v1705 = vpop.f32.mrf.mxu0
    %v1706 = vadd.f32 0.0, %v1705
    %v1707 = vpop.f32.mrf.mxu0
    %v1708 = vadd.f32 0.0, %v1707
    %1709 = vdwg.mxu0
    %1710 = vmatpush.bf16.msra.mxu0 %v618
    %1711 = vmatpush.bf16.msra.mxu0 %v614
    %1712 = vmatpush.bf16.msra.mxu0 %v610
    %1713 = vmatpush.bf16.msra.mxu0 %v606
    %1714 = vmatpush.bf16.msra.mxu0 %v602
    %1715 = vmatpush.bf16.msra.mxu0 %v598
    %1716 = vmatpush.bf16.msra.mxu0 %v594
    %1717 = vmatpush.bf16.msra.mxu0 %v590
    %1718 = vmatmul.bf16.gmra.mxu0 %v1681
    %v1719 = vpop.f32.mrf.mxu0
    %v1720 = vadd.f32 0.0, %v1719
    %v1721 = vpop.f32.mrf.mxu0
    %v1722 = vadd.f32 0.0, %v1721
    %1723 = vdwg.mxu0
    %1724 = vmatpush.bf16.msra.mxu0 %v619
    %1725 = vmatpush.bf16.msra.mxu0 %v615
    %1726 = vmatpush.bf16.msra.mxu0 %v611
    %1727 = vmatpush.bf16.msra.mxu0 %v607
    %1728 = vmatpush.bf16.msra.mxu0 %v603
    %1729 = vmatpush.bf16.msra.mxu0 %v599
    %1730 = vmatpush.bf16.msra.mxu0 %v595
    %1731 = vmatpush.bf16.msra.mxu0 %v591
    %1732 = vmatmul.bf16.gmra.mxu0 %v1681
    %v1733 = vpop.f32.mrf.mxu0
    %v1734 = vadd.f32 0.0, %v1733
    %v1735 = vpop.f32.mrf.mxu0
    %v1736 = vadd.f32 0.0, %v1735
    %1737 = vdwg.mxu0
    %v1738 = vadd.f32 %v1673, %v1692
    %v1739 = vadd.f32 %v1674, %v1706
    %v1740 = vadd.f32 %v1675, %v1720
    %v1741 = vadd.f32 %v1676, %v1734
    %v1742 = vadd.f32 %v1677, %v1694
    %v1743 = vadd.f32 %v1678, %v1708
    %v1744 = vadd.f32 %v1679, %v1722
    %v1745 = vadd.f32 %v1680, %v1736
    %v1746 = vxor.u32 %v1738, 2147483648
    %v1747 = vxor.u32 %v1739, 2147483648
    %v1748 = vxor.u32 %v1740, 2147483648
    %v1749 = vxor.u32 %v1742, 2147483648
    %v1750 = vxor.u32 %v1743, 2147483648
    %v1751 = vxor.u32 %v1744, 2147483648
    %v1752 = vmul.f32 %v1746, 1.442695
    %v1753 = vpow.pop %v1752
    %v1754 = vmul.f32 %v1747, 1.442695
    %v1755 = vpow.pop %v1754
    %v1756 = vmul.f32 %v1748, 1.442695
    %v1757 = vpow.pop %v1756
    %v1758 = vmul.f32 %v1749, 1.442695
    %v1759 = vpow.pop %v1758
    %v1760 = vmul.f32 %v1750, 1.442695
    %v1761 = vpow.pop %v1760
    %v1762 = vmul.f32 %v1751, 1.442695
    %v1763 = vpow.pop %v1762
    %v1764 = vadd.f32 %v1753, 1.0
    %v1765 = vadd.f32 %v1755, 1.0
    %v1766 = vadd.f32 %v1757, 1.0
    %v1767 = vadd.f32 %v1759, 1.0
    %v1768 = vadd.f32 %v1761, 1.0
    %v1769 = vadd.f32 %v1763, 1.0
    %v1770 = vrcp.pop %v1764
    %v1771 = vmul.f32 %v1764, %v1770
    %v1772 = vsub.f32 1.0, %v1771
    %v1773 = vmul.f32 %v1770, %v1772
    %v1774 = vadd.f32 %v1770, %v1773
    %vm1775 = vweird.f32 %v1764
    %vm1776 = vweird.f32 %v1770
    %vm1777 = vmor %vm1775, %vm1776
    %v1778 = vsel %vm1777, %v1770, %v1774
    %v1779 = vand.u32 2147483647, %v1764
    %vm1780 = vcmp.eq.f32.partialorder %v1779, 8.507059e+37
    %v1781 = vand.u32 %v1764, 2147483648
    %v1782 = vor.u32 1.1754944e-38, %v1781
    %v1783 = vsel %vm1780, %v1782, %v1778
    %v1784 = vmul.f32 1.0, %v1783
    %v1785 = vrcp.pop %v1765
    %v1786 = vmul.f32 %v1765, %v1785
    %v1787 = vsub.f32 1.0, %v1786
    %v1788 = vmul.f32 %v1785, %v1787
    %v1789 = vadd.f32 %v1785, %v1788
    %vm1790 = vweird.f32 %v1765
    %vm1791 = vweird.f32 %v1785
    %vm1792 = vmor %vm1790, %vm1791
    %v1793 = vsel %vm1792, %v1785, %v1789
    %v1794 = vand.u32 2147483647, %v1765
    %vm1795 = vcmp.eq.f32.partialorder %v1794, 8.507059e+37
    %v1796 = vand.u32 %v1765, 2147483648
    %v1797 = vor.u32 1.1754944e-38, %v1796
    %v1798 = vsel %vm1795, %v1797, %v1793
    %v1799 = vmul.f32 1.0, %v1798
    %v1800 = vrcp.pop %v1766
    %v1801 = vmul.f32 %v1766, %v1800
    %v1802 = vsub.f32 1.0, %v1801
    %v1803 = vmul.f32 %v1800, %v1802
    %v1804 = vadd.f32 %v1800, %v1803
    %vm1805 = vweird.f32 %v1766
    %vm1806 = vweird.f32 %v1800
    %vm1807 = vmor %vm1805, %vm1806
    %v1808 = vsel %vm1807, %v1800, %v1804
    %v1809 = vand.u32 2147483647, %v1766
    %vm1810 = vcmp.eq.f32.partialorder %v1809, 8.507059e+37
    %v1811 = vand.u32 %v1766, 2147483648
    %v1812 = vor.u32 1.1754944e-38, %v1811
    %v1813 = vsel %vm1810, %v1812, %v1808
    %v1814 = vmul.f32 1.0, %v1813
    %v1815 = vrcp.pop %v1767
    %v1816 = vmul.f32 %v1767, %v1815
    %v1817 = vsub.f32 1.0, %v1816
    %v1818 = vmul.f32 %v1815, %v1817
    %v1819 = vadd.f32 %v1815, %v1818
    %vm1820 = vweird.f32 %v1767
    %vm1821 = vweird.f32 %v1815
    %vm1822 = vmor %vm1820, %vm1821
    %v1823 = vsel %vm1822, %v1815, %v1819
    %v1824 = vand.u32 2147483647, %v1767
    %vm1825 = vcmp.eq.f32.partialorder %v1824, 8.507059e+37
    %v1826 = vand.u32 %v1767, 2147483648
    %v1827 = vor.u32 1.1754944e-38, %v1826
    %v1828 = vsel %vm1825, %v1827, %v1823
    %v1829 = vmul.f32 1.0, %v1828
    %v1830 = vrcp.pop %v1768
    %v1831 = vmul.f32 %v1768, %v1830
    %v1832 = vsub.f32 1.0, %v1831
    %v1833 = vmul.f32 %v1830, %v1832
    %v1834 = vadd.f32 %v1830, %v1833
    %vm1835 = vweird.f32 %v1768
    %vm1836 = vweird.f32 %v1830
    %vm1837 = vmor %vm1835, %vm1836
    %v1838 = vsel %vm1837, %v1830, %v1834
    %v1839 = vand.u32 2147483647, %v1768
    %vm1840 = vcmp.eq.f32.partialorder %v1839, 8.507059e+37
    %v1841 = vand.u32 %v1768, 2147483648
    %v1842 = vor.u32 1.1754944e-38, %v1841
    %v1843 = vsel %vm1840, %v1842, %v1838
    %v1844 = vmul.f32 1.0, %v1843
    %v1845 = vrcp.pop %v1769
    %v1846 = vmul.f32 %v1769, %v1845
    %v1847 = vsub.f32 1.0, %v1846
    %v1848 = vmul.f32 %v1845, %v1847
    %v1849 = vadd.f32 %v1845, %v1848
    %vm1850 = vweird.f32 %v1769
    %vm1851 = vweird.f32 %v1845
    %vm1852 = vmor %vm1850, %vm1851
    %v1853 = vsel %vm1852, %v1845, %v1849
    %v1854 = vand.u32 2147483647, %v1769
    %vm1855 = vcmp.eq.f32.partialorder %v1854, 8.507059e+37
    %v1856 = vand.u32 %v1769, 2147483648
    %v1857 = vor.u32 1.1754944e-38, %v1856
    %v1858 = vsel %vm1855, %v1857, %v1853
    %v1859 = vmul.f32 1.0, %v1858
    %v1860 = vtanh.pop %v1741
    %v1861 = vtanh.pop %v1745
    %v1862 = vmul.f32 %v1799, %v1660
    %v1863 = vmul.f32 %v1844, %v1661
    %v1864 = vmul.f32 %v1784, %v1860
    %v1865 = vmul.f32 %v1829, %v1861
    %v1866 = vadd.f32 %v1862, %v1864
    %v1867 = vadd.f32 %v1863, %v1865
    %v1868 = vtanh.pop %v1866
    %v1869 = vtanh.pop %v1867
    %v1870 = vmul.f32 %v1814, %v1868
    %v1871 = vmul.f32 %v1859, %v1869
    %s1872 = smul.u32 12, 4
    %s1873 = smul.addr %s1872, 4
    %s1874 = scalar_lea.vmem [#allocation4], %s1873
    %v1875 = vld [vmem:[%s1874] sm:$0xff]
    %v1876 = vld [vmem:[%s1874 + $0x8] sm:$0xff]
    %v1877 = vld [vmem:[%s1874 + $0x10] sm:$0xff]
    %v1878 = vld [vmem:[%s1874 + $0x18] sm:$0xff]
    %v1879 = vunpack.c.l.bf16 %v1875
    %v1880 = vunpack.c.h.bf16 %v1875
    %v1881 = vunpack.c.l.bf16 %v1876
    %v1882 = vunpack.c.h.bf16 %v1876
    %v1883 = vunpack.c.l.bf16 %v1877
    %v1884 = vunpack.c.h.bf16 %v1877
    %v1885 = vunpack.c.l.bf16 %v1878
    %v1886 = vunpack.c.h.bf16 %v1878
    %v1887 = vpack.c.bf16 %v1871, %v1870
    %1888 = vmatpush.bf16.msra.mxu0 %v616
    %1889 = vmatpush.bf16.msra.mxu0 %v612
    %1890 = vmatpush.bf16.msra.mxu0 %v608
    %1891 = vmatpush.bf16.msra.mxu0 %v604
    %1892 = vmatpush.bf16.msra.mxu0 %v600
    %1893 = vmatpush.bf16.msra.mxu0 %v596
    %1894 = vmatpush.bf16.msra.mxu0 %v592
    %1895 = vmatpush.bf16.msra.mxu0 %v588
    %1896 = vmatmul.bf16.gmra.mxu0 %v1887
    %v1897 = vpop.f32.mrf.mxu0
    %v1898 = vadd.f32 0.0, %v1897
    %v1899 = vpop.f32.mrf.mxu0
    %v1900 = vadd.f32 0.0, %v1899
    %1901 = vdwg.mxu0
    %1902 = vmatpush.bf16.msra.mxu0 %v617
    %1903 = vmatpush.bf16.msra.mxu0 %v613
    %1904 = vmatpush.bf16.msra.mxu0 %v609
    %1905 = vmatpush.bf16.msra.mxu0 %v605
    %1906 = vmatpush.bf16.msra.mxu0 %v601
    %1907 = vmatpush.bf16.msra.mxu0 %v597
    %1908 = vmatpush.bf16.msra.mxu0 %v593
    %1909 = vmatpush.bf16.msra.mxu0 %v589
    %1910 = vmatmul.bf16.gmra.mxu0 %v1887
    %v1911 = vpop.f32.mrf.mxu0
    %v1912 = vadd.f32 0.0, %v1911
    %v1913 = vpop.f32.mrf.mxu0
    %v1914 = vadd.f32 0.0, %v1913
    %1915 = vdwg.mxu0
    %1916 = vmatpush.bf16.msra.mxu0 %v618
    %1917 = vmatpush.bf16.msra.mxu0 %v614
    %1918 = vmatpush.bf16.msra.mxu0 %v610
    %1919 = vmatpush.bf16.msra.mxu0 %v606
    %1920 = vmatpush.bf16.msra.mxu0 %v602
    %1921 = vmatpush.bf16.msra.mxu0 %v598
    %1922 = vmatpush.bf16.msra.mxu0 %v594
    %1923 = vmatpush.bf16.msra.mxu0 %v590
    %1924 = vmatmul.bf16.gmra.mxu0 %v1887
    %v1925 = vpop.f32.mrf.mxu0
    %v1926 = vadd.f32 0.0, %v1925
    %v1927 = vpop.f32.mrf.mxu0
    %v1928 = vadd.f32 0.0, %v1927
    %1929 = vdwg.mxu0
    %1930 = vmatpush.bf16.msra.mxu0 %v619
    %1931 = vmatpush.bf16.msra.mxu0 %v615
    %1932 = vmatpush.bf16.msra.mxu0 %v611
    %1933 = vmatpush.bf16.msra.mxu0 %v607
    %1934 = vmatpush.bf16.msra.mxu0 %v603
    %1935 = vmatpush.bf16.msra.mxu0 %v599
    %1936 = vmatpush.bf16.msra.mxu0 %v595
    %1937 = vmatpush.bf16.msra.mxu0 %v591
    %1938 = vmatmul.bf16.gmra.mxu0 %v1887
    %v1939 = vpop.f32.mrf.mxu0
    %v1940 = vadd.f32 0.0, %v1939
    %v1941 = vpop.f32.mrf.mxu0
    %v1942 = vadd.f32 0.0, %v1941
    %1943 = vdwg.mxu0
    %v1944 = vadd.f32 %v1879, %v1898
    %v1945 = vadd.f32 %v1880, %v1912
    %v1946 = vadd.f32 %v1881, %v1926
    %v1947 = vadd.f32 %v1882, %v1940
    %v1948 = vadd.f32 %v1883, %v1900
    %v1949 = vadd.f32 %v1884, %v1914
    %v1950 = vadd.f32 %v1885, %v1928
    %v1951 = vadd.f32 %v1886, %v1942
    %v1952 = vxor.u32 %v1944, 2147483648
    %v1953 = vxor.u32 %v1945, 2147483648
    %v1954 = vxor.u32 %v1946, 2147483648
    %v1955 = vxor.u32 %v1948, 2147483648
    %v1956 = vxor.u32 %v1949, 2147483648
    %v1957 = vxor.u32 %v1950, 2147483648
    %v1958 = vmul.f32 %v1952, 1.442695
    %v1959 = vpow.pop %v1958
    %v1960 = vmul.f32 %v1953, 1.442695
    %v1961 = vpow.pop %v1960
    %v1962 = vmul.f32 %v1954, 1.442695
    %v1963 = vpow.pop %v1962
    %v1964 = vmul.f32 %v1955, 1.442695
    %v1965 = vpow.pop %v1964
    %v1966 = vmul.f32 %v1956, 1.442695
    %v1967 = vpow.pop %v1966
    %v1968 = vmul.f32 %v1957, 1.442695
    %v1969 = vpow.pop %v1968
    %v1970 = vadd.f32 %v1959, 1.0
    %v1971 = vadd.f32 %v1961, 1.0
    %v1972 = vadd.f32 %v1963, 1.0
    %v1973 = vadd.f32 %v1965, 1.0
    %v1974 = vadd.f32 %v1967, 1.0
    %v1975 = vadd.f32 %v1969, 1.0
    %v1976 = vrcp.pop %v1970
    %v1977 = vmul.f32 %v1970, %v1976
    %v1978 = vsub.f32 1.0, %v1977
    %v1979 = vmul.f32 %v1976, %v1978
    %v1980 = vadd.f32 %v1976, %v1979
    %vm1981 = vweird.f32 %v1970
    %vm1982 = vweird.f32 %v1976
    %vm1983 = vmor %vm1981, %vm1982
    %v1984 = vsel %vm1983, %v1976, %v1980
    %v1985 = vand.u32 2147483647, %v1970
    %vm1986 = vcmp.eq.f32.partialorder %v1985, 8.507059e+37
    %v1987 = vand.u32 %v1970, 2147483648
    %v1988 = vor.u32 1.1754944e-38, %v1987
    %v1989 = vsel %vm1986, %v1988, %v1984
    %v1990 = vmul.f32 1.0, %v1989
    %v1991 = vrcp.pop %v1971
    %v1992 = vmul.f32 %v1971, %v1991
    %v1993 = vsub.f32 1.0, %v1992
    %v1994 = vmul.f32 %v1991, %v1993
    %v1995 = vadd.f32 %v1991, %v1994
    %vm1996 = vweird.f32 %v1971
    %vm1997 = vweird.f32 %v1991
    %vm1998 = vmor %vm1996, %vm1997
    %v1999 = vsel %vm1998, %v1991, %v1995
    %v2000 = vand.u32 2147483647, %v1971
    %vm2001 = vcmp.eq.f32.partialorder %v2000, 8.507059e+37
    %v2002 = vand.u32 %v1971, 2147483648
    %v2003 = vor.u32 1.1754944e-38, %v2002
    %v2004 = vsel %vm2001, %v2003, %v1999
    %v2005 = vmul.f32 1.0, %v2004
    %v2006 = vrcp.pop %v1972
    %v2007 = vmul.f32 %v1972, %v2006
    %v2008 = vsub.f32 1.0, %v2007
    %v2009 = vmul.f32 %v2006, %v2008
    %v2010 = vadd.f32 %v2006, %v2009
    %vm2011 = vweird.f32 %v1972
    %vm2012 = vweird.f32 %v2006
    %vm2013 = vmor %vm2011, %vm2012
    %v2014 = vsel %vm2013, %v2006, %v2010
    %v2015 = vand.u32 2147483647, %v1972
    %vm2016 = vcmp.eq.f32.partialorder %v2015, 8.507059e+37
    %v2017 = vand.u32 %v1972, 2147483648
    %v2018 = vor.u32 1.1754944e-38, %v2017
    %v2019 = vsel %vm2016, %v2018, %v2014
    %v2020 = vmul.f32 1.0, %v2019
    %v2021 = vrcp.pop %v1973
    %v2022 = vmul.f32 %v1973, %v2021
    %v2023 = vsub.f32 1.0, %v2022
    %v2024 = vmul.f32 %v2021, %v2023
    %v2025 = vadd.f32 %v2021, %v2024
    %vm2026 = vweird.f32 %v1973
    %vm2027 = vweird.f32 %v2021
    %vm2028 = vmor %vm2026, %vm2027
    %v2029 = vsel %vm2028, %v2021, %v2025
    %v2030 = vand.u32 2147483647, %v1973
    %vm2031 = vcmp.eq.f32.partialorder %v2030, 8.507059e+37
    %v2032 = vand.u32 %v1973, 2147483648
    %v2033 = vor.u32 1.1754944e-38, %v2032
    %v2034 = vsel %vm2031, %v2033, %v2029
    %v2035 = vmul.f32 1.0, %v2034
    %v2036 = vrcp.pop %v1974
    %v2037 = vmul.f32 %v1974, %v2036
    %v2038 = vsub.f32 1.0, %v2037
    %v2039 = vmul.f32 %v2036, %v2038
    %v2040 = vadd.f32 %v2036, %v2039
    %vm2041 = vweird.f32 %v1974
    %vm2042 = vweird.f32 %v2036
    %vm2043 = vmor %vm2041, %vm2042
    %v2044 = vsel %vm2043, %v2036, %v2040
    %v2045 = vand.u32 2147483647, %v1974
    %vm2046 = vcmp.eq.f32.partialorder %v2045, 8.507059e+37
    %v2047 = vand.u32 %v1974, 2147483648
    %v2048 = vor.u32 1.1754944e-38, %v2047
    %v2049 = vsel %vm2046, %v2048, %v2044
    %v2050 = vmul.f32 1.0, %v2049
    %v2051 = vrcp.pop %v1975
    %v2052 = vmul.f32 %v1975, %v2051
    %v2053 = vsub.f32 1.0, %v2052
    %v2054 = vmul.f32 %v2051, %v2053
    %v2055 = vadd.f32 %v2051, %v2054
    %vm2056 = vweird.f32 %v1975
    %vm2057 = vweird.f32 %v2051
    %vm2058 = vmor %vm2056, %vm2057
    %v2059 = vsel %vm2058, %v2051, %v2055
    %v2060 = vand.u32 2147483647, %v1975
    %vm2061 = vcmp.eq.f32.partialorder %v2060, 8.507059e+37
    %v2062 = vand.u32 %v1975, 2147483648
    %v2063 = vor.u32 1.1754944e-38, %v2062
    %v2064 = vsel %vm2061, %v2063, %v2059
    %v2065 = vmul.f32 1.0, %v2064
    %v2066 = vtanh.pop %v1947
    %v2067 = vtanh.pop %v1951
    %v2068 = vmul.f32 %v2005, %v1866
    %v2069 = vmul.f32 %v2050, %v1867
    %v2070 = vmul.f32 %v1990, %v2066
    %v2071 = vmul.f32 %v2035, %v2067
    %v2072 = vadd.f32 %v2068, %v2070
    %v2073 = vadd.f32 %v2069, %v2071
    %v2074 = vtanh.pop %v2072
    %v2075 = vtanh.pop %v2073
    %v2076 = vmul.f32 %v2020, %v2074
    %v2077 = vmul.f32 %v2065, %v2075
    %s2078 = smul.u32 14, 4
    %s2079 = smul.addr %s2078, 4
    %s2080 = scalar_lea.vmem [#allocation4], %s2079
    %v2081 = vld [vmem:[%s2080] sm:$0xff]
    %v2082 = vld [vmem:[%s2080 + $0x8] sm:$0xff]
    %v2083 = vld [vmem:[%s2080 + $0x10] sm:$0xff]
    %v2084 = vld [vmem:[%s2080 + $0x18] sm:$0xff]
    %v2085 = vunpack.c.l.bf16 %v2081
    %v2086 = vunpack.c.h.bf16 %v2081
    %v2087 = vunpack.c.l.bf16 %v2082
    %v2088 = vunpack.c.h.bf16 %v2082
    %v2089 = vunpack.c.l.bf16 %v2083
    %v2090 = vunpack.c.h.bf16 %v2083
    %v2091 = vunpack.c.l.bf16 %v2084
    %v2092 = vunpack.c.h.bf16 %v2084
    %v2093 = vpack.c.bf16 %v2077, %v2076
    %2094 = vmatpush.bf16.msra.mxu0 %v616
    %2095 = vmatpush.bf16.msra.mxu0 %v612
    %2096 = vmatpush.bf16.msra.mxu0 %v608
    %2097 = vmatpush.bf16.msra.mxu0 %v604
    %2098 = vmatpush.bf16.msra.mxu0 %v600
    %2099 = vmatpush.bf16.msra.mxu0 %v596
    %2100 = vmatpush.bf16.msra.mxu0 %v592
    %2101 = vmatpush.bf16.msra.mxu0 %v588
    %2102 = vmatmul.bf16.gmra.mxu0 %v2093
    %v2103 = vpop.f32.mrf.mxu0
    %v2104 = vadd.f32 0.0, %v2103
    %v2105 = vpop.f32.mrf.mxu0
    %v2106 = vadd.f32 0.0, %v2105
    %2107 = vdwg.mxu0
    %2108 = vmatpush.bf16.msra.mxu0 %v617
    %2109 = vmatpush.bf16.msra.mxu0 %v613
    %2110 = vmatpush.bf16.msra.mxu0 %v609
    %2111 = vmatpush.bf16.msra.mxu0 %v605
    %2112 = vmatpush.bf16.msra.mxu0 %v601
    %2113 = vmatpush.bf16.msra.mxu0 %v597
    %2114 = vmatpush.bf16.msra.mxu0 %v593
    %2115 = vmatpush.bf16.msra.mxu0 %v589
    %2116 = vmatmul.bf16.gmra.mxu0 %v2093
    %v2117 = vpop.f32.mrf.mxu0
    %v2118 = vadd.f32 0.0, %v2117
    %v2119 = vpop.f32.mrf.mxu0
    %v2120 = vadd.f32 0.0, %v2119
    %2121 = vdwg.mxu0
    %2122 = vmatpush.bf16.msra.mxu0 %v618
    %2123 = vmatpush.bf16.msra.mxu0 %v614
    %2124 = vmatpush.bf16.msra.mxu0 %v610
    %2125 = vmatpush.bf16.msra.mxu0 %v606
    %2126 = vmatpush.bf16.msra.mxu0 %v602
    %2127 = vmatpush.bf16.msra.mxu0 %v598
    %2128 = vmatpush.bf16.msra.mxu0 %v594
    %2129 = vmatpush.bf16.msra.mxu0 %v590
    %2130 = vmatmul.bf16.gmra.mxu0 %v2093
    %v2131 = vpop.f32.mrf.mxu0
    %v2132 = vadd.f32 0.0, %v2131
    %v2133 = vpop.f32.mrf.mxu0
    %v2134 = vadd.f32 0.0, %v2133
    %2135 = vdwg.mxu0
    %2136 = vmatpush.bf16.msra.mxu0 %v619
    %2137 = vmatpush.bf16.msra.mxu0 %v615
    %2138 = vmatpush.bf16.msra.mxu0 %v611
    %2139 = vmatpush.bf16.msra.mxu0 %v607
    %2140 = vmatpush.bf16.msra.mxu0 %v603
    %2141 = vmatpush.bf16.msra.mxu0 %v599
    %2142 = vmatpush.bf16.msra.mxu0 %v595
    %2143 = vmatpush.bf16.msra.mxu0 %v591
    %2144 = vmatmul.bf16.gmra.mxu0 %v2093
    %v2145 = vpop.f32.mrf.mxu0
    %v2146 = vadd.f32 0.0, %v2145
    %v2147 = vpop.f32.mrf.mxu0
    %v2148 = vadd.f32 0.0, %v2147
    %2149 = vdwg.mxu0
    %v2150 = vadd.f32 %v2085, %v2104
    %v2151 = vadd.f32 %v2086, %v2118
    %v2152 = vadd.f32 %v2087, %v2132
    %v2153 = vadd.f32 %v2088, %v2146
    %v2154 = vadd.f32 %v2089, %v2106
    %v2155 = vadd.f32 %v2090, %v2120
    %v2156 = vadd.f32 %v2091, %v2134
    %v2157 = vadd.f32 %v2092, %v2148
    %v2158 = vxor.u32 %v2150, 2147483648
    %v2159 = vxor.u32 %v2151, 2147483648
    %v2160 = vxor.u32 %v2152, 2147483648
    %v2161 = vxor.u32 %v2154, 2147483648
    %v2162 = vxor.u32 %v2155, 2147483648
    %v2163 = vxor.u32 %v2156, 2147483648
    %v2164 = vmul.f32 %v2158, 1.442695
    %v2165 = vpow.pop %v2164
    %v2166 = vmul.f32 %v2159, 1.442695
    %v2167 = vpow.pop %v2166
    %v2168 = vmul.f32 %v2160, 1.442695
    %v2169 = vpow.pop %v2168
    %v2170 = vmul.f32 %v2161, 1.442695
    %v2171 = vpow.pop %v2170
    %v2172 = vmul.f32 %v2162, 1.442695
    %v2173 = vpow.pop %v2172
    %v2174 = vmul.f32 %v2163, 1.442695
    %v2175 = vpow.pop %v2174
    %v2176 = vadd.f32 %v2165, 1.0
    %v2177 = vadd.f32 %v2167, 1.0
    %v2178 = vadd.f32 %v2169, 1.0
    %v2179 = vadd.f32 %v2171, 1.0
    %v2180 = vadd.f32 %v2173, 1.0
    %v2181 = vadd.f32 %v2175, 1.0
    %v2182 = vrcp.pop %v2176
    %v2183 = vmul.f32 %v2176, %v2182
    %v2184 = vsub.f32 1.0, %v2183
    %v2185 = vmul.f32 %v2182, %v2184
    %v2186 = vadd.f32 %v2182, %v2185
    %vm2187 = vweird.f32 %v2176
    %vm2188 = vweird.f32 %v2182
    %vm2189 = vmor %vm2187, %vm2188
    %v2190 = vsel %vm2189, %v2182, %v2186
    %v2191 = vand.u32 2147483647, %v2176
    %vm2192 = vcmp.eq.f32.partialorder %v2191, 8.507059e+37
    %v2193 = vand.u32 %v2176, 2147483648
    %v2194 = vor.u32 1.1754944e-38, %v2193
    %v2195 = vsel %vm2192, %v2194, %v2190
    %v2196 = vmul.f32 1.0, %v2195
    %v2197 = vrcp.pop %v2177
    %v2198 = vmul.f32 %v2177, %v2197
    %v2199 = vsub.f32 1.0, %v2198
    %v2200 = vmul.f32 %v2197, %v2199
    %v2201 = vadd.f32 %v2197, %v2200
    %vm2202 = vweird.f32 %v2177
    %vm2203 = vweird.f32 %v2197
    %vm2204 = vmor %vm2202, %vm2203
    %v2205 = vsel %vm2204, %v2197, %v2201
    %v2206 = vand.u32 2147483647, %v2177
    %vm2207 = vcmp.eq.f32.partialorder %v2206, 8.507059e+37
    %v2208 = vand.u32 %v2177, 2147483648
    %v2209 = vor.u32 1.1754944e-38, %v2208
    %v2210 = vsel %vm2207, %v2209, %v2205
    %v2211 = vmul.f32 1.0, %v2210
    %v2212 = vrcp.pop %v2178
    %v2213 = vmul.f32 %v2178, %v2212
    %v2214 = vsub.f32 1.0, %v2213
    %v2215 = vmul.f32 %v2212, %v2214
    %v2216 = vadd.f32 %v2212, %v2215
    %vm2217 = vweird.f32 %v2178
    %vm2218 = vweird.f32 %v2212
    %vm2219 = vmor %vm2217, %vm2218
    %v2220 = vsel %vm2219, %v2212, %v2216
    %v2221 = vand.u32 2147483647, %v2178
    %vm2222 = vcmp.eq.f32.partialorder %v2221, 8.507059e+37
    %v2223 = vand.u32 %v2178, 2147483648
    %v2224 = vor.u32 1.1754944e-38, %v2223
    %v2225 = vsel %vm2222, %v2224, %v2220
    %v2226 = vmul.f32 1.0, %v2225
    %v2227 = vrcp.pop %v2179
    %v2228 = vmul.f32 %v2179, %v2227
    %v2229 = vsub.f32 1.0, %v2228
    %v2230 = vmul.f32 %v2227, %v2229
    %v2231 = vadd.f32 %v2227, %v2230
    %vm2232 = vweird.f32 %v2179
    %vm2233 = vweird.f32 %v2227
    %vm2234 = vmor %vm2232, %vm2233
    %v2235 = vsel %vm2234, %v2227, %v2231
    %v2236 = vand.u32 2147483647, %v2179
    %vm2237 = vcmp.eq.f32.partialorder %v2236, 8.507059e+37
    %v2238 = vand.u32 %v2179, 2147483648
    %v2239 = vor.u32 1.1754944e-38, %v2238
    %v2240 = vsel %vm2237, %v2239, %v2235
    %v2241 = vmul.f32 1.0, %v2240
    %v2242 = vrcp.pop %v2180
    %v2243 = vmul.f32 %v2180, %v2242
    %v2244 = vsub.f32 1.0, %v2243
    %v2245 = vmul.f32 %v2242, %v2244
    %v2246 = vadd.f32 %v2242, %v2245
    %vm2247 = vweird.f32 %v2180
    %vm2248 = vweird.f32 %v2242
    %vm2249 = vmor %vm2247, %vm2248
    %v2250 = vsel %vm2249, %v2242, %v2246
    %v2251 = vand.u32 2147483647, %v2180
    %vm2252 = vcmp.eq.f32.partialorder %v2251, 8.507059e+37
    %v2253 = vand.u32 %v2180, 2147483648
    %v2254 = vor.u32 1.1754944e-38, %v2253
    %v2255 = vsel %vm2252, %v2254, %v2250
    %v2256 = vmul.f32 1.0, %v2255
    %v2257 = vrcp.pop %v2181
    %v2258 = vmul.f32 %v2181, %v2257
    %v2259 = vsub.f32 1.0, %v2258
    %v2260 = vmul.f32 %v2257, %v2259
    %v2261 = vadd.f32 %v2257, %v2260
    %vm2262 = vweird.f32 %v2181
    %vm2263 = vweird.f32 %v2257
    %vm2264 = vmor %vm2262, %vm2263
    %v2265 = vsel %vm2264, %v2257, %v2261
    %v2266 = vand.u32 2147483647, %v2181
    %vm2267 = vcmp.eq.f32.partialorder %v2266, 8.507059e+37
    %v2268 = vand.u32 %v2181, 2147483648
    %v2269 = vor.u32 1.1754944e-38, %v2268
    %v2270 = vsel %vm2267, %v2269, %v2265
    %v2271 = vmul.f32 1.0, %v2270
    %v2272 = vtanh.pop %v2153
    %v2273 = vtanh.pop %v2157
    %v2274 = vmul.f32 %v2211, %v2072
    %v2275 = vmul.f32 %v2256, %v2073
    %v2276 = vmul.f32 %v2196, %v2272
    %v2277 = vmul.f32 %v2241, %v2273
    %v2278 = vadd.f32 %v2274, %v2276
    %v2279 = vadd.f32 %v2275, %v2277
    %v2280 = vtanh.pop %v2278
    %v2281 = vtanh.pop %v2279
    %v2282 = vmul.f32 %v2226, %v2280
    %v2283 = vmul.f32 %v2271, %v2281
    %p2284 = scmp.lt.s32.totalorder 0, 0
    // Predicated region
    $region38: #{tpu_custom_call.1} parent=1 // pred_check
      %p2285 = pneg %p2284
    $region39: #{tpu_custom_call.1} parent=1 // pred_check_branch
      %2287 = sbr.rel (%p2285) target = $region41
    $region40: #{tpu_custom_call.1} parent=1 // pred_region
      %2288 = vst [vmem:[#allocation2] sm:$0xff] %v2282
      %2289 = vst [vmem:[#allocation2 + $0x8] sm:$0xff] %v2283
      %2290 = vst [vmem:[#allocation3] sm:$0xff] %v2278
      %2291 = vst [vmem:[#allocation3 + $0x8] sm:$0xff] %v2279
    $region41: #{tpu_custom_call.1} parent=1 // pred_fallthru
      _
    // Predicated region
    $region42: #{tpu_custom_call.1} parent=1 // pred_check
      %p2292 = pneg %p57
    $region43: #{tpu_custom_call.1} parent=1 // pred_check_branch
      %2294 = sbr.rel (%p2292) target = $region45
    $region44: #{tpu_custom_call.1} parent=1 // pred_region
      %v2295 = vpack.c.bf16 %v2283, %v2282
      %v2296 = vld [vmem:[%s4] sm:$0xf]
      %v2297 = vld [vmem:[%s4 + $0x4] sm:$0xf]
      %v2298 = vld [vmem:[%s4 + $0x8] sm:$0xf]
      %v2299 = vld [vmem:[%s4 + $0xc] sm:$0xf]
      %v2300 = vld [vmem:[%s4 + $0x10] sm:$0xf]
      %v2301 = vld [vmem:[%s4 + $0x14] sm:$0xf]
      %v2302 = vld [vmem:[%s4 + $0x18] sm:$0xf]
      %v2303 = vld [vmem:[%s4 + $0x1c] sm:$0xf]
      %v2304 = vld [vmem:[%s4 + $0x20] sm:$0xf]
      %v2305 = vld [vmem:[%s4 + $0x24] sm:$0xf]
      %v2306 = vld [vmem:[%s4 + $0x28] sm:$0xf]
      %v2307 = vld [vmem:[%s4 + $0x2c] sm:$0xf]
      %v2308 = vld [vmem:[%s4 + $0x30] sm:$0xf]
      %v2309 = vld [vmem:[%s4 + $0x34] sm:$0xf]
      %v2310 = vld [vmem:[%s4 + $0x38] sm:$0xf]
      %v2311 = vld [vmem:[%s4 + $0x3c] sm:$0xf]
      %v2312 = vld [vmem:[%s5] sm:$0x1]
      %v2314 = vperm.slane %v2312, 0
      %v2332 = vunpack.c.l.b16 %v2296
      %v2333 = vunpack.c.l.b16 %v2297
      %v2334 = vunpack.c.l.b16 %v2298
      %v2335 = vunpack.c.l.b16 %v2299
      %v2336 = vunpack.c.l.b16 %v2300
      %v2337 = vunpack.c.l.b16 %v2301
      %v2338 = vunpack.c.l.b16 %v2302
      %v2339 = vunpack.c.l.b16 %v2303
      %v2340 = vunpack.c.l.b16 %v2304
      %v2341 = vunpack.c.l.b16 %v2305
      %v2342 = vunpack.c.l.b16 %v2306
      %v2343 = vunpack.c.l.b16 %v2307
      %v2344 = vunpack.c.l.b16 %v2308
      %v2345 = vunpack.c.l.b16 %v2309
      %v2346 = vunpack.c.l.b16 %v2310
      %v2347 = vunpack.c.l.b16 %v2311
      %v2348 = vpack.c.b16 %v2333, %v2332
      %v2349 = vpack.c.b16 %v2335, %v2334
      %v2350 = vpack.c.b16 %v2337, %v2336
      %v2351 = vpack.c.b16 %v2339, %v2338
      %v2352 = vpack.c.b16 %v2341, %v2340
      %v2353 = vpack.c.b16 %v2343, %v2342
      %v2354 = vpack.c.b16 %v2345, %v2344
      %v2355 = vpack.c.b16 %v2347, %v2346
      %2364 = vmatpush.bf16.msra.mxu0 %v2355
      %2365 = vmatpush.bf16.msra.mxu0 %v2354
      %2366 = vmatpush.bf16.msra.mxu0 %v2353
      %2367 = vmatpush.bf16.msra.mxu0 %v2352
      %2368 = vmatpush.bf16.msra.mxu0 %v2351
      %2369 = vmatpush.bf16.msra.mxu0 %v2350
      %2370 = vmatpush.bf16.msra.mxu0 %v2349
      %2371 = vmatpush.bf16.msra.mxu0 %v2348
      %2372 = vmatmul.bf16.gmra.mxu0 %v2295
      %v2373 = vpop.f32.mrf.mxu0
      %v2374 = vadd.f32 %v2314, %v2373
      %v2375 = vpop.f32.mrf.mxu0
      %v2376 = vadd.f32 %v2314, %v2375
      %2377 = vdwg.mxu0
      %2378 = vst [vmem:[#allocation10] sm:$0xff] %v2374
      %2379 = vst [vmem:[#allocation10 + $0x8] sm:$0xff] %v2376
    $region45: #{tpu_custom_call.1} parent=1 // pred_fallthru
      _
    // Predicated region
    $region46: #{tpu_custom_call.1} parent=1 // pred_check
      _
    $region47: #{tpu_custom_call.1} parent=1 // pred_check_branch
      %2381 = sbr.rel (0) target = $region49
    $region48: #{tpu_custom_call.1} parent=1 // pred_region
      %2383 = vsyncadd [#allocation7], 0
      %s2384 = sshll.u32 [#allocation10], 4
      %s2385 = int_to_ptr.vmem [resolvable:$true] %s2384
      %s2386 = sshll.u32 %s6, 4
      %s2387 = int_to_ptr.hbm [resolvable:$true] %s2386
      %2392 = dma.vmem_to_hbm [thread:$0]  %s2385, 256, %s2387, [#allocation7], 128, 128, 8
    $region49: #{tpu_custom_call.1} parent=1 // pred_fallthru
      _
    // Predicated region
    $region50: #{tpu_custom_call.1} parent=1 // pred_check
      _
    $region51: #{tpu_custom_call.1} parent=1 // pred_check_branch
      %2394 = sbr.rel (0) target = $region53
    $region52: #{tpu_custom_call.1} parent=1 // pred_region
      %2396 = dma.done [#allocation7], 256
    $region53: #{tpu_custom_call.1} parent=1 // pred_fallthru
      _
    %2397 = vsyncpa [#allocation6], 1
    %2398 = vsyncpa [#allocation9], 1
    %2399 = vsyncpa [#allocation7], 1

</llo_original>
